<compile_context>
chip_gen: v7x
topology: tpu7x:2x2x1
jax: 0.10.0
libtpu: 0.0.40
codegen_flags: <defaults>
</compile_context>

<pallas_src>
import functools

import jax
import jax.numpy as jnp
from jax.experimental import pallas as pl
from jax.experimental.pallas import tpu as pltpu

BN_EPS = 1e-5


def _speaker_decoder_kernel(x_ref, w_ref, b_ref, pool_ref, emb_ref,
                            s1_ref, s2_ref, *, t_total: int):
    """Grid = (B_tiles, T_tiles).  T (axis 1) is the reduction axis."""
    t_idx = pl.program_id(1)

    @pl.when(t_idx == 0)
    def _():
        s1_ref[...] = jnp.zeros_like(s1_ref)
        s2_ref[...] = jnp.zeros_like(s2_ref)

    # Single pass over the (bt, C, Tt) tile.
    x = x_ref[...]
    s1_ref[...] += jnp.sum(x, axis=-1)
    s2_ref[...] += jnp.sum(x * x, axis=-1)

    @pl.when(t_idx == pl.num_programs(1) - 1)
    def _():
        s1 = s1_ref[...]
        s2 = s2_ref[...]
        mean = s1 * jnp.float32(1.0 / t_total)
        # Unbiased variance (torch.std default); clamp guards f32 cancellation.
        var = jnp.maximum((s2 - s1 * mean) * jnp.float32(1.0 / (t_total - 1)), 0.0)
        std = jnp.sqrt(var)
        pooled = jnp.concatenate([mean, std], axis=-1)            # (bt, 2C)
        # One K=2C MXU pass; W/b already have BatchNorm folded in.
        z = (jnp.dot(pooled, w_ref[...], preferred_element_type=jnp.float32)
             + b_ref[...])                                        # (bt, E)
        emb_ref[...] = z                       # emb = BN(Linear(pooled))
        pool_ref[...] = jnp.maximum(z, 0.0)    # pool = ReLU(emb)


def prepare_params(w, b, gamma, beta, running_mean, running_var, eps=BN_EPS):
    """One-time parameter prep (outside the per-call path).

    Folds eval-mode BatchNorm1d into the Linear weights:
      W' = (W * scale[:, None]).T, b' = (b - running_mean) * scale + beta,
      scale = gamma / sqrt(running_var + eps).
    w: (E, 2C) PyTorch nn.Linear layout.  Returns (w_fold (2C, E), b_fold (1, E)).
    """
    scale = gamma * jax.lax.rsqrt(running_var + eps)              # (E,)
    w_fold = jnp.transpose(w * scale[:, None])                    # (2C, E)
    b_fold = ((b - running_mean) * scale + beta).reshape(1, -1)   # (1, E)
    return w_fold, b_fold


def speaker_decoder_forward(x, w_fold, b_fold, *, b_tile=None, t_tile=None):
    """x: (B, C, T) f32.  w_fold/b_fold from prepare_params().  Returns (pool, emb)."""
    B, C, T = x.shape
    E = w_fold.shape[1]
    assert w_fold.shape[0] == 2 * C
    assert T > 1, "unbiased std requires T > 1"

    if b_tile is None:
        b_tile = 8 if B % 8 == 0 else B
    if t_tile is None:
        if T % 128 == 0:
            # Multiple of 128, capped so double-buffered x tiles stay well inside
            # v7x's 64 MiB VMEM even for production-scale C.
            t_tile = 128
            while t_tile * 2 <= 512 and T % (t_tile * 2) == 0:
                t_tile *= 2
        else:
            t_tile = T  # small / ragged T: one full-T block
    assert B % b_tile == 0 and T % t_tile == 0

    grid = (B // b_tile, T // t_tile)
    kernel = functools.partial(_speaker_decoder_kernel, t_total=T)

    pool, emb = pl.pallas_call(
        kernel,
        out_shape=(jax.ShapeDtypeStruct((B, E), jnp.float32),
                   jax.ShapeDtypeStruct((B, E), jnp.float32)),
        grid_spec=pltpu.PrefetchScalarGridSpec(
            num_scalar_prefetch=0,
            grid=grid,
            in_specs=[
                pl.BlockSpec((b_tile, C, t_tile), lambda i, t: (i, 0, t)),
                pl.BlockSpec((2 * C, E), lambda i, t: (0, 0)),   # weights resident
                pl.BlockSpec((1, E), lambda i, t: (0, 0)),
            ],
            out_specs=(
                pl.BlockSpec((b_tile, E), lambda i, t: (i, 0)),
                pl.BlockSpec((b_tile, E), lambda i, t: (i, 0)),
            ),
            scratch_shapes=[
                pltpu.VMEM((b_tile, C), jnp.float32),   # s1 = sum(x)
                pltpu.VMEM((b_tile, C), jnp.float32),   # s2 = sum(x*x)
            ],
        ),
        compiler_params=pltpu.CompilerParams(
            dimension_semantics=("parallel", "arbitrary"),
            vmem_limit_bytes=32 * 1024 * 1024,
        ),
    )(x, w_fold, b_fold)
    return pool, emb


def reference_forward(x, w, b, gamma, beta, running_mean, running_var):
    """Pure-JAX reference of the PyTorch forward (eval-mode BN)."""
    mean = jnp.mean(x, axis=-1)
    std = jnp.std(x, axis=-1, ddof=1)                 # torch.std default: unbiased
    pooled = jnp.concatenate([mean, std], axis=-1)    # (B, 2C)
    z = pooled @ w.T + b
    bn = (z - running_mean) * gamma / jnp.sqrt(running_var + BN_EPS) + beta
    return jnp.maximum(bn, 0.0), bn


if __name__ == "__main__":
    # Small shapes consistent with the module: batch=16, feat_in=64, T=256, emb_sizes=256.
    B, C, T, E = 16, 64, 256, 256

    key = jax.random.PRNGKey(0)
    kx, kw, kb, kg, kbe, krm, krv = jax.random.split(key, 7)

    x = jax.random.normal(kx, (B, C, T), dtype=jnp.float32)

    # Linear weight: xavier_uniform (as init_weights does); nontrivial bias and
    # BN gamma/beta/running stats to exercise the BN fold (eval-mode semantics).
    fan_in, fan_out = 2 * C, E
    bound = (6.0 / (fan_in + fan_out)) ** 0.5
    w = jax.random.uniform(kw, (E, 2 * C), minval=-bound, maxval=bound,
                           dtype=jnp.float32)
    b = 0.1 * jax.random.normal(kb, (E,), dtype=jnp.float32)
    gamma = 1.0 + 0.1 * jax.random.normal(kg, (E,), dtype=jnp.float32)
    beta = 0.1 * jax.random.normal(kbe, (E,), dtype=jnp.float32)
    running_mean = 0.1 * jax.random.normal(krm, (E,), dtype=jnp.float32)
    running_var = jax.random.uniform(krv, (E,), minval=0.5, maxval=1.5,
                                     dtype=jnp.float32)

    # One-time parameter preparation (hoisted out of the per-call path).
    w_fold, b_fold = prepare_params(w, b, gamma, beta, running_mean, running_var)
    w_fold, b_fold = jax.block_until_ready((w_fold, b_fold))

    pool, emb = speaker_decoder_forward(x, w_fold, b_fold)
    jax.block_until_ready((pool, emb))

    pool_ref, emb_ref = reference_forward(x, w, b, gamma, beta,
                                          running_mean, running_var)
    assert jnp.allclose(pool, pool_ref, atol=2e-4, rtol=2e-4)
    assert jnp.allclose(emb, emb_ref, atol=2e-4, rtol=2e-4)

    print("KERNEL_OK")
</pallas_src>

<mosaic_0001>
module attributes {stable_mosaic.version = 11 : i64} {
  func.func @_speaker_decoder_kernel(%arg0: i32, %arg1: i32, %arg2: memref<8x64x256xf32, #tpu.memory_space<vmem>>, %arg3: memref<128x256xf32, #tpu.memory_space<vmem>>, %arg4: memref<1x256xf32, #tpu.memory_space<vmem>>, %arg5: memref<8x256xf32, #tpu.memory_space<vmem>>, %arg6: memref<8x256xf32, #tpu.memory_space<vmem>>, %arg7: memref<8x64xf32, #tpu.memory_space<vmem>>, %arg8: memref<8x64xf32, #tpu.memory_space<vmem>>) attributes {dimension_semantics = [#tpu.dimension_semantics<parallel>, #tpu.dimension_semantics<arbitrary>], iteration_bounds = array<i64: 2, 1>, scalar_prefetch = 0 : i64, scratch_operands = 2 : i64, tpu.core_type = #tpu.core_type<tc>, window_params = [{transform_indices = @transform_0, window_bounds = array<i64: 8, 64, 256>}, {pipeline_mode = #tpu.pipeline_mode<synchronous>, transform_indices = @transform_1, window_bounds = array<i64: 128, 256>}, {pipeline_mode = #tpu.pipeline_mode<synchronous>, transform_indices = @transform_2, window_bounds = array<i64: 1, 256>}, {transform_indices = @transform_3, window_bounds = array<i64: 8, 256>}, {transform_indices = @transform_4, window_bounds = array<i64: 8, 256>}]} {
    %c0_i32 = arith.constant 0 : i32
    %0 = arith.cmpi eq, %arg1, %c0_i32 : i32
    %1 = arith.extui %0 : i1 to i32
    %c0_i32_0 = arith.constant 0 : i32
    %2 = arith.cmpi ne, %1, %c0_i32_0 : i32
    scf.if %2 {
      %cst_14 = arith.constant 0.000000e+00 : f32
      %16 = vector.broadcast %cst_14 : f32 to vector<8x64xf32>
      %c0_15 = arith.constant 0 : index
      %c0_16 = arith.constant 0 : index
      %17 = vector.load %arg7[%c0_15, %c0_16] : memref<8x64xf32, #tpu.memory_space<vmem>>, vector<8x64xf32>
      tpu.vector_store %arg7[%c0_15, %c0_16], %16 {strides = array<i32>} : memref<8x64xf32, #tpu.memory_space<vmem>>, vector<8x64xf32>,
      %cst_17 = arith.constant 0.000000e+00 : f32
      %18 = vector.broadcast %cst_17 : f32 to vector<8x64xf32>
      %c0_18 = arith.constant 0 : index
      %c0_19 = arith.constant 0 : index
      %19 = vector.load %arg8[%c0_18, %c0_19] : memref<8x64xf32, #tpu.memory_space<vmem>>, vector<8x64xf32>
      tpu.vector_store %arg8[%c0_18, %c0_19], %18 {strides = array<i32>} : memref<8x64xf32, #tpu.memory_space<vmem>>, vector<8x64xf32>,
    } else {
    }
    %c0 = arith.constant 0 : index
    %c0_1 = arith.constant 0 : index
    %c0_2 = arith.constant 0 : index
    %3 = vector.load %arg2[%c0, %c0_1, %c0_2] : memref<8x64x256xf32, #tpu.memory_space<vmem>>, vector<8x64x256xf32>
    %c0_3 = arith.constant 0 : index
    %c0_4 = arith.constant 0 : index
    %4 = vector.load %arg7[%c0_3, %c0_4] : memref<8x64xf32, #tpu.memory_space<vmem>>, vector<8x64xf32>
    %cst = arith.constant dense<0.000000e+00> : vector<8x64xf32>
    %5 = vector.multi_reduction <add>, %3, %cst [2] : vector<8x64x256xf32> to vector<8x64xf32>
    %6 = arith.addf %4, %5 : vector<8x64xf32>
    %c0_5 = arith.constant 0 : index
    %c0_6 = arith.constant 0 : index
    %7 = vector.load %arg7[%c0_5, %c0_6] : memref<8x64xf32, #tpu.memory_space<vmem>>, vector<8x64xf32>
    tpu.vector_store %arg7[%c0_5, %c0_6], %6 {strides = array<i32>} : memref<8x64xf32, #tpu.memory_space<vmem>>, vector<8x64xf32>,
    %c0_7 = arith.constant 0 : index
    %c0_8 = arith.constant 0 : index
    %8 = vector.load %arg8[%c0_7, %c0_8] : memref<8x64xf32, #tpu.memory_space<vmem>>, vector<8x64xf32>
    %9 = arith.mulf %3, %3 : vector<8x64x256xf32>
    %cst_9 = arith.constant dense<0.000000e+00> : vector<8x64xf32>
    %10 = vector.multi_reduction <add>, %9, %cst_9 [2] : vector<8x64x256xf32> to vector<8x64xf32>
    %11 = arith.addf %8, %10 : vector<8x64xf32>
    %c0_10 = arith.constant 0 : index
    %c0_11 = arith.constant 0 : index
    %12 = vector.load %arg8[%c0_10, %c0_11] : memref<8x64xf32, #tpu.memory_space<vmem>>, vector<8x64xf32>
    tpu.vector_store %arg8[%c0_10, %c0_11], %11 {strides = array<i32>} : memref<8x64xf32, #tpu.memory_space<vmem>>, vector<8x64xf32>,
    %c0_i32_12 = arith.constant 0 : i32
    %13 = arith.cmpi eq, %arg1, %c0_i32_12 : i32
    %14 = arith.extui %13 : i1 to i32
    %c0_i32_13 = arith.constant 0 : i32
    %15 = arith.cmpi ne, %14, %c0_i32_13 : i32
    scf.if %15 {
      %c0_14 = arith.constant 0 : index
      %c0_15 = arith.constant 0 : index
      %16 = vector.load %arg7[%c0_14, %c0_15] : memref<8x64xf32, #tpu.memory_space<vmem>>, vector<8x64xf32>
      %c0_16 = arith.constant 0 : index
      %c0_17 = arith.constant 0 : index
      %17 = vector.load %arg8[%c0_16, %c0_17] : memref<8x64xf32, #tpu.memory_space<vmem>>, vector<8x64xf32>
      %cst_18 = arith.constant 3.906250e-03 : f32
      %18 = vector.broadcast %cst_18 : f32 to vector<8x64xf32>
      %19 = arith.mulf %16, %18 : vector<8x64xf32>
      %20 = arith.mulf %16, %19 : vector<8x64xf32>
      %21 = arith.subf %17, %20 : vector<8x64xf32>
      %cst_19 = arith.constant 0.00392156886 : f32
      %22 = vector.broadcast %cst_19 : f32 to vector<8x64xf32>
      %23 = arith.mulf %21, %22 : vector<8x64xf32>
      %cst_20 = arith.constant 0.000000e+00 : f32
      %24 = vector.broadcast %cst_20 : f32 to vector<8x64xf32>
      %25 = arith.maximumf %23, %24 : vector<8x64xf32>
      %26 = math.sqrt %25 : vector<8x64xf32>
      %27 = tpu.concatenate %19, %26 in 1 : vector<8x64xf32>, vector<8x64xf32> -> vector<8x128xf32>
      %c0_21 = arith.constant 0 : index
      %c0_22 = arith.constant 0 : index
      %28 = vector.load %arg3[%c0_21, %c0_22] : memref<128x256xf32, #tpu.memory_space<vmem>>, vector<128x256xf32>
      %cst_23 = arith.constant dense<0.000000e+00> : vector<8x256xf32>
      %29 = tpu.matmul %27, %28, %cst_23 {dimension_numbers = #tpu.dot_dimension_numbers<[1], [0], [0], [1], [0, 0, 1, 1], [], []>} : vector<8x128xf32>, vector<128x256xf32>, vector<8x256xf32> -> vector<8x256xf32>
      %c0_24 = arith.constant 0 : index
      %c0_25 = arith.constant 0 : index
      %30 = vector.load %arg4[%c0_24, %c0_25] : memref<1x256xf32, #tpu.memory_space<vmem>>, vector<1x256xf32>
      %31 = vector.broadcast %30 : vector<1x256xf32> to vector<8x256xf32>
      %32 = arith.addf %29, %31 : vector<8x256xf32>
      %c0_26 = arith.constant 0 : index
      %c0_27 = arith.constant 0 : index
      %33 = vector.load %arg6[%c0_26, %c0_27] : memref<8x256xf32, #tpu.memory_space<vmem>>, vector<8x256xf32>
      tpu.vector_store %arg6[%c0_26, %c0_27], %32 {strides = array<i32>} : memref<8x256xf32, #tpu.memory_space<vmem>>, vector<8x256xf32>,
      %cst_28 = arith.constant 0.000000e+00 : f32
      %34 = vector.broadcast %cst_28 : f32 to vector<8x256xf32>
      %35 = arith.maximumf %32, %34 : vector<8x256xf32>
      %c0_29 = arith.constant 0 : index
      %c0_30 = arith.constant 0 : index
      %36 = vector.load %arg5[%c0_29, %c0_30] : memref<8x256xf32, #tpu.memory_space<vmem>>, vector<8x256xf32>
      tpu.vector_store %arg5[%c0_29, %c0_30], %35 {strides = array<i32>} : memref<8x256xf32, #tpu.memory_space<vmem>>, vector<8x256xf32>,
    } else {
    }
    return
  }
  func.func @transform_0(%arg0: i32, %arg1: i32) -> (i32, i32, i32) {
    %c0_i32 = arith.constant 0 : i32
    %c0_i32_0 = arith.constant 0 : i32
    return %arg0, %c0_i32, %arg1 : i32, i32, i32
  }
  func.func @transform_1(%arg0: i32, %arg1: i32) -> (i32, i32) {
    %c0_i32 = arith.constant 0 : i32
    %c0_i32_0 = arith.constant 0 : i32
    %c0_i32_1 = arith.constant 0 : i32
    return %c0_i32, %c0_i32_0 : i32, i32
  }
  func.func @transform_2(%arg0: i32, %arg1: i32) -> (i32, i32) {
    %c0_i32 = arith.constant 0 : i32
    %c0_i32_0 = arith.constant 0 : i32
    %c0_i32_1 = arith.constant 0 : i32
    return %c0_i32, %c0_i32_0 : i32, i32
  }
  func.func @transform_3(%arg0: i32, %arg1: i32) -> (i32, i32) {
    %c0_i32 = arith.constant 0 : i32
    %c0_i32_0 = arith.constant 0 : i32
    return %arg0, %c0_i32 : i32, i32
  }
  func.func @transform_4(%arg0: i32, %arg1: i32) -> (i32, i32) {
    %c0_i32 = arith.constant 0 : i32
    %c0_i32_0 = arith.constant 0 : i32
    return %arg0, %c0_i32 : i32, i32
  }
}

</mosaic_0001>

<llo_original>
// kernel: tpu_custom_call.1
$region0: #{tpu_custom_call.1}
  #allocation0 [shape = 'u32[]', space=smem, size = 0x4, offset = 0x4, fixed_abs, tag = 'smem constant byte address 0x4 - core index']
  #allocation1 [shape = 'u32[144,128]{1,0:T(1,128)}', space=vmem, size = 0x12000, scoped, tag = 'internal scratch']
  #allocation2 [shape = 'f32[8,64]{1,0:T(8,128)}', space=vmem, size = 0x1000, scoped, tag = 'scratch operand']
  #allocation3 [shape = 'f32[8,64]{1,0:T(8,128)}', space=vmem, size = 0x1000, scoped, tag = 'scratch operand']
  %s0 = inlined_call_operand.hbm [shape: f32[16,64,256], index: 0, kind: input, shape index: {}]
  %s1 = inlined_call_operand.hbm [shape: f32[128,256], index: 1, kind: input, shape index: {}]
  %s2 = inlined_call_operand.vmem [shape: f32[1,256], index: 2, kind: input, shape index: {}]
  %s3 = inlined_call_operand.hbm [shape: f32[16,256], index: 3, kind: output, shape index: {0}]
  %s4 = inlined_call_operand.hbm [shape: f32[16,256], index: 4, kind: output, shape index: {1}]
  %5 = xla_tuple %s3, %s4
  %s6 = sld [smem:[#allocation0]]
  $region69: #{tpu_custom_call.1} parent=0
    _
  %s8 = ssub.s32 1, %s6
  %s9 = scalar_select 0, %s8, %s6
  $region1: #{tpu_custom_call.1} parent=0
    #allocation4 [shape = 'u8[1048576]{0}', space=vmem, size = 0x100000, scoped, tag = 'input window, operand 0']
    #allocation5 [shape = 's32[2]{0}', space=sflag, size = 0x8, scoped, tag = 'scoped memory for tpu_custom_call.1']
    #allocation6 [shape = 's32[2]{0}', space=sflag, size = 0x8, scoped, tag = 'scoped memory for tpu_custom_call.1']
    #allocation7 [shape = 'u8[131072]{0}', space=vmem, size = 0x20000, scoped, tag = 'input window, operand 1, single buffered']
    #allocation8 [shape = 's32[1]{0}', space=sflag, size = 0x4, scoped, tag = 'scoped memory for tpu_custom_call.1']
    #allocation9 [shape = 'u8[16384]{0}', space=vmem, size = 0x4000, scoped, tag = 'output window, operand 0']
    #allocation10 [shape = 'u8[16384]{0}', space=vmem, size = 0x4000, scoped, tag = 'output window, operand 1']
    #allocation11 [shape = 's32[2]{0}', space=sflag, size = 0x8, scoped, tag = 'scoped memory for tpu_custom_call.1']
    %10 = vsyncpa [#allocation5], 0
    %s11 = scalar_lea.sflag [#allocation5], 1
    %12 = vsyncpa %s11, 0
    %13 = vsyncpa [#allocation8], 0
    %14 = vsyncpa [#allocation6], 0
    %s15 = scalar_lea.sflag [#allocation6], 1
    %16 = vsyncpa %s15, 0
    %17 = vsyncpa [#allocation11], 0
    %s18 = scalar_lea.sflag [#allocation11], 1
    %19 = vsyncpa %s18, 0
    loop: start=0, step=1, limit=4
    $region2: #{tpu_custom_call.1} parent=1 // loop_pre_header
      _
    $region3: #{tpu_custom_call.1} parent=1 // loop_header
      %s21 = sphi 0, %s25
      %p22 = scmp.ge.s32.totalorder %s21, 4
      %s28 = sphi 0, %s40
      %s29 = sphi 0, %s36
      %s30 = sphi 0, %s28
      %s31 = sphi 0, %s29
      %s32 = sphi 0, %s30
      %s33 = sphi 0, %s31
      %s45 = sphi 0, %s47
      %s48 = sphi 0, %s45
      %s49 = sphi 0, %s48
      %s65 = sphi 0, %s49
      %s69 = sphi 0, %s69
      %s71 = sphi 0, %s69
      %s72 = sphi 0, %s71
      %s86 = sphi 0, %s72
      %s90 = sphi 0, %s90
      %s92 = sphi 0, %s90
      %s93 = sphi 0, %s92
      %s107 = sphi 0, %s93
      %s113 = sphi 0, %s115
      %s116 = sphi 0, %s113
      %s117 = sphi 0, %s116
      %s133 = sphi 0, %s117
      %s139 = sphi 0, %s141
      %s142 = sphi 0, %s139
      %s143 = sphi 0, %s142
      %s159 = sphi 0, %s143
    $region4: #{tpu_custom_call.1} parent=1 // loop_header_branch
      %24 = sbr.rel (%p22) target = $region8
    $region5: #{tpu_custom_call.1} parent=1 // loop_body
      %s26 = ssub.s32 %s21, 1
      %s27 = ssub.s32 %s21, 2
      %s34 = sadd.s32 1, %s29
      %p35 = scmp.ge.s32.totalorder %s34, 1
      %s36 = scalar_select %p35, 0, %s34
      %s37 = sadd.s32 1, %s28
      %s38 = scalar_select %p35, %s37, %s28
      %p39 = scmp.ge.s32.totalorder %s38, 2
      %s40 = scalar_select %p39, 0, %s38
      %s41 = ssub.s32 %s28, %s40
      %s42 = ssub.s32 %s29, %s36
      %s43 = sor.u32 %s41, %s42
      %p44 = scmp.eq.s32.totalorder %s43, 0
      %s46 = sadd.s32 %s45, 1
      %s47 = scalar_select %p44, %s45, %s46
      %p50 = pneg %p44
      %p51 = scmp.eq.s32.totalorder %s21, 1
      %p52 = por %p50, %p51
      %p53 = scmp.ne.s32.totalorder %s45, %s48
      %p54 = scmp.eq.s32.totalorder %s21, 0
      %p55 = por %p53, %p54
      %p56 = scmp.ne.s32.totalorder %s45, %s48
      %p57 = scmp.eq.s32.totalorder %s26, 1
      %p58 = por %p56, %p57
      %p59 = scmp.ne.s32.totalorder %s48, %s49
      %p60 = scmp.eq.s32.totalorder %s26, 0
      %p61 = por %p59, %p60
      %p62 = scmp.ne.s32.totalorder %s48, %s49
      %p63 = scmp.eq.s32.totalorder %s27, 1
      %p64 = por %p62, %p63
      %p66 = scmp.ne.s32.totalorder %s49, %s65
      %p67 = scmp.eq.s32.totalorder %s27, 0
      %p68 = por %p66, %p67
      %s70 = sadd.s32 %s69, 1
      %p73 = scmp.eq.s32.totalorder %s21, 1
      %p74 = scmp.ne.s32.totalorder %s69, %s71
      %p75 = scmp.eq.s32.totalorder %s21, 0
      %p76 = por %p74, %p75
      %p77 = scmp.ne.s32.totalorder %s69, %s71
      %p78 = scmp.eq.s32.totalorder %s26, 1
      %p79 = por %p77, %p78
      %p80 = scmp.ne.s32.totalorder %s71, %s72
      %p81 = scmp.eq.s32.totalorder %s26, 0
      %p82 = por %p80, %p81
      %p83 = scmp.ne.s32.totalorder %s71, %s72
      %p84 = scmp.eq.s32.totalorder %s27, 1
      %p85 = por %p83, %p84
      %p87 = scmp.ne.s32.totalorder %s72, %s86
      %p88 = scmp.eq.s32.totalorder %s27, 0
      %p89 = por %p87, %p88
      %s91 = sadd.s32 %s90, 1
      %p94 = scmp.eq.s32.totalorder %s21, 1
      %p95 = scmp.ne.s32.totalorder %s90, %s92
      %p96 = scmp.eq.s32.totalorder %s21, 0
      %p97 = por %p95, %p96
      %p98 = scmp.ne.s32.totalorder %s90, %s92
      %p99 = scmp.eq.s32.totalorder %s26, 1
      %p100 = por %p98, %p99
      %p101 = scmp.ne.s32.totalorder %s92, %s93
      %p102 = scmp.eq.s32.totalorder %s26, 0
      %p103 = por %p101, %p102
      %p104 = scmp.ne.s32.totalorder %s92, %s93
      %p105 = scmp.eq.s32.totalorder %s27, 1
      %p106 = por %p104, %p105
      %p108 = scmp.ne.s32.totalorder %s93, %s107
      %p109 = scmp.eq.s32.totalorder %s27, 0
      %p110 = por %p108, %p109
      %s111 = ssub.s32 %s28, %s40
      %p112 = scmp.eq.s32.totalorder %s111, 0
      %s114 = sadd.s32 %s113, 1
      %s115 = scalar_select %p112, %s113, %s114
      %p118 = pneg %p112
      %p119 = scmp.eq.s32.totalorder %s21, 1
      %p120 = por %p118, %p119
      %p121 = scmp.ne.s32.totalorder %s113, %s116
      %p122 = scmp.eq.s32.totalorder %s21, 0
      %p123 = por %p121, %p122
      %p124 = scmp.ne.s32.totalorder %s113, %s116
      %p125 = scmp.eq.s32.totalorder %s26, 1
      %p126 = por %p124, %p125
      %p127 = scmp.ne.s32.totalorder %s116, %s117
      %p128 = scmp.eq.s32.totalorder %s26, 0
      %p129 = por %p127, %p128
      %p130 = scmp.ne.s32.totalorder %s116, %s117
      %p131 = scmp.eq.s32.totalorder %s27, 1
      %p132 = por %p130, %p131
      %p134 = scmp.ne.s32.totalorder %s117, %s133
      %p135 = scmp.eq.s32.totalorder %s27, 0
      %p136 = por %p134, %p135
      %s137 = ssub.s32 %s28, %s40
      %p138 = scmp.eq.s32.totalorder %s137, 0
      %s140 = sadd.s32 %s139, 1
      %s141 = scalar_select %p138, %s139, %s140
      %p144 = pneg %p138
      %p145 = scmp.eq.s32.totalorder %s21, 1
      %p146 = por %p144, %p145
      %p147 = scmp.ne.s32.totalorder %s139, %s142
      %p148 = scmp.eq.s32.totalorder %s21, 0
      %p149 = por %p147, %p148
      %p150 = scmp.ne.s32.totalorder %s139, %s142
      %p151 = scmp.eq.s32.totalorder %s26, 1
      %p152 = por %p150, %p151
      %p153 = scmp.ne.s32.totalorder %s142, %s143
      %p154 = scmp.eq.s32.totalorder %s26, 0
      %p155 = por %p153, %p154
      %p156 = scmp.ne.s32.totalorder %s142, %s143
      %p157 = scmp.eq.s32.totalorder %s27, 1
      %p158 = por %p156, %p157
      %p160 = scmp.ne.s32.totalorder %s143, %s159
      %p161 = scmp.eq.s32.totalorder %s27, 0
      %p162 = por %p160, %p161
      %p163 = scmp.le.s32.totalorder 1, %s21
      %p164 = scmp.lt.s32.totalorder %s21, 3
      %p165 = pnand %p163, %p164
      %p166 = pneg %p165
      // Predicated region
      $region9: #{tpu_custom_call.1} parent=5 // pred_check
        _
      $region10: #{tpu_custom_call.1} parent=5 // pred_check_branch
        %168 = sbr.rel (%p165) target = $region12
      $region11: #{tpu_custom_call.1} parent=5 // pred_region
        %s169 = ssub.s32 %s21, 1
        // Predicated region
        $region13: #{tpu_custom_call.1} parent=11 // pred_check
          %p170 = pneg %p82
        $region14: #{tpu_custom_call.1} parent=11 // pred_check_branch
          %172 = sbr.rel (%p170) target = $region16
        $region15: #{tpu_custom_call.1} parent=11 // pred_region
          %s174 = ssub.s32 4096, 4096
          %175 = vsyncadd [#allocation8], %s174
          %s176 = sshll.u32 [#allocation7], 4
          %s177 = int_to_ptr.vmem [resolvable:$true] %s176
          %182 = dma.hbm_to_vmem [thread:$0]  %s1, 4096, %s177, [#allocation8], 256, 256, 16
        $region16: #{tpu_custom_call.1} parent=11 // pred_fallthru
          _
        // Predicated region
        $region17: #{tpu_custom_call.1} parent=11 // pred_check
          %p183 = pneg %p103
        $region18: #{tpu_custom_call.1} parent=11 // pred_check_branch
          %185 = sbr.rel (%p183) target = $region20
        $region19: #{tpu_custom_call.1} parent=11 // pred_region
          _
        $region20: #{tpu_custom_call.1} parent=11 // pred_fallthru
          _
      $region12: #{tpu_custom_call.1} parent=5 // pred_fallthru
        _
      %p186 = scmp.lt.s32.totalorder %s21, 2
      // Predicated region
      $region21: #{tpu_custom_call.1} parent=5 // pred_check
        %p187 = pneg %p186
      $region22: #{tpu_custom_call.1} parent=5 // pred_check_branch
        %189 = sbr.rel (%p187) target = $region24
      $region23: #{tpu_custom_call.1} parent=5 // pred_region
        // Predicated region
        $region25: #{tpu_custom_call.1} parent=23 // pred_check
          %p190 = pneg %p55
        $region26: #{tpu_custom_call.1} parent=23 // pred_check_branch
          %192 = sbr.rel (%p190) target = $region28
        $region27: #{tpu_custom_call.1} parent=23 // pred_region
          %s193 = sand.u32 %s45, 1
          %s194 = scalar_lea.sflag [#allocation5], %s193
          %s195 = sand.u32 %s45, 1
          %s196 = smul.addr %s195, 1024
          %s197 = scalar_lea.vmem [#allocation4], %s196
          %s198 = smul.u32 8, %s28
          %s199 = smul.u32 2, %s29
          %s201 = ssub.s32 16384, 16384
          %202 = vsyncadd %s194, %s201
          %s203 = smul.addr %s198, 16
          %s204 = sadd.s32 %s199, %s203
          %s205 = smul.addr %s204, 128
          %s206 = scalar_lea.hbm %s0, %s205
          %s207 = sshll.u32 %s197, 4
          %s208 = int_to_ptr.vmem [resolvable:$true] %s207
          %213 = dma.hbm_to_vmem [thread:$0]  %s206, 16384, %s208, %s194, 256, 256, 16
        $region28: #{tpu_custom_call.1} parent=23 // pred_fallthru
          _
      $region24: #{tpu_custom_call.1} parent=5 // pred_fallthru
        _
      %p214 = scmp.le.s32.totalorder 1, %s21
      %p215 = scmp.lt.s32.totalorder %s21, 3
      %p216 = pnand %p214, %p215
      %p217 = pneg %p216
      // Predicated region
      $region29: #{tpu_custom_call.1} parent=5 // pred_check
        _
      $region30: #{tpu_custom_call.1} parent=5 // pred_check_branch
        %219 = sbr.rel (%p216) target = $region32
      $region31: #{tpu_custom_call.1} parent=5 // pred_region
        %s220 = ssub.s32 %s21, 1
        %s221 = sand.u32 %s48, 1
        %s222 = scalar_lea.sflag [#allocation5], %s221
        %s223 = sand.u32 %s48, 1
        %s224 = smul.addr %s223, 1024
        %s225 = scalar_lea.vmem [#allocation4], %s224
        // Predicated region
        $region33: #{tpu_custom_call.1} parent=31 // pred_check
          %p226 = pneg %p61
        $region34: #{tpu_custom_call.1} parent=31 // pred_check_branch
          %228 = sbr.rel (%p226) target = $region36
        $region35: #{tpu_custom_call.1} parent=31 // pred_region
          %229 = dma.done %s222, 16384
        $region36: #{tpu_custom_call.1} parent=31 // pred_fallthru
          _
        // Predicated region
        $region37: #{tpu_custom_call.1} parent=31 // pred_check
          %p230 = pneg %p82
        $region38: #{tpu_custom_call.1} parent=31 // pred_check_branch
          %232 = sbr.rel (%p230) target = $region40
        $region39: #{tpu_custom_call.1} parent=31 // pred_region
          %233 = dma.done [#allocation8], 4096
        $region40: #{tpu_custom_call.1} parent=31 // pred_fallthru
          _
        %s234 = sand.u32 %s48, 1
        %s235 = scalar_lea.sflag [#allocation5], %s234
        %s236 = sand.u32 %s48, 1
        %s237 = smul.addr %s236, 1024
        %s238 = scalar_lea.vmem [#allocation4], %s237
        %p239 = pneg %p61
        %p240 = pneg %p58
        %p241 = pneg %p82
        %p242 = pneg %p79
        %p243 = pneg %p103
        %p244 = pneg %p100
        %p245 = pneg %p129
        %p246 = pneg %p126
        %s247 = sand.u32 %s116, 1
        %s248 = scalar_lea.sflag [#allocation6], %s247
        %s249 = sand.u32 %s116, 1
        %s250 = smul.addr %s249, 16
        %s251 = scalar_lea.vmem [#allocation9], %s250
        %p252 = pneg %p155
        %p253 = pneg %p152
        %s254 = sand.u32 %s142, 1
        %s255 = scalar_lea.sflag [#allocation11], %s254
        %s256 = sand.u32 %s142, 1
        %s257 = smul.addr %s256, 16
        %s258 = scalar_lea.vmem [#allocation10], %s257
        %s259 = smul.u32 8, %s30
        %s260 = smul.u32 2, %s31
        %p261 = scmp.eq.s32.totalorder %s31, 0
        // Predicated region
        $region41: #{tpu_custom_call.1} parent=31 // pred_check
          %p262 = pneg %p261
        $region42: #{tpu_custom_call.1} parent=31 // pred_check_branch
          %264 = sbr.rel (%p262) target = $region44
        $region43: #{tpu_custom_call.1} parent=31 // pred_region
          %vm265 = vcmask 523264
          %266 = vst.msk [vmem:[#allocation2] sm:$0xff] %vm265, 0.0
          %267 = vst.msk [vmem:[#allocation3] sm:$0xff] %vm265, 0.0
        $region44: #{tpu_custom_call.1} parent=31 // pred_fallthru
          _
        %v268 = vld [vmem:[%s225] sm:$0xff]
        %v269 = vld [vmem:[%s225 + $0x8] sm:$0xff]
        %v270 = vld [vmem:[%s225 + $0x10] sm:$0xff]
        %v271 = vld [vmem:[%s225 + $0x18] sm:$0xff]
        %v272 = vld [vmem:[%s225 + $0x20] sm:$0xff]
        %v273 = vld [vmem:[%s225 + $0x28] sm:$0xff]
        %v274 = vld [vmem:[%s225 + $0x30] sm:$0xff]
        %v275 = vld [vmem:[%s225 + $0x38] sm:$0xff]
        %v276 = vld [vmem:[%s225 + $0x40] sm:$0xff]
        %v277 = vld [vmem:[%s225 + $0x48] sm:$0xff]
        %v278 = vld [vmem:[%s225 + $0x50] sm:$0xff]
        %v279 = vld [vmem:[%s225 + $0x58] sm:$0xff]
        %v280 = vld [vmem:[%s225 + $0x60] sm:$0xff]
        %v281 = vld [vmem:[%s225 + $0x68] sm:$0xff]
        %v282 = vld [vmem:[%s225 + $0x70] sm:$0xff]
        %v283 = vld [vmem:[%s225 + $0x78] sm:$0xff]
        %v284 = vld [vmem:[%s225 + $0x80] sm:$0xff]
        %v285 = vld [vmem:[%s225 + $0x88] sm:$0xff]
        %v286 = vld [vmem:[%s225 + $0x90] sm:$0xff]
        %v287 = vld [vmem:[%s225 + $0x98] sm:$0xff]
        %v288 = vld [vmem:[%s225 + $0xa0] sm:$0xff]
        %v289 = vld [vmem:[%s225 + $0xa8] sm:$0xff]
        %v290 = vld [vmem:[%s225 + $0xb0] sm:$0xff]
        %v291 = vld [vmem:[%s225 + $0xb8] sm:$0xff]
        %v292 = vld [vmem:[%s225 + $0xc0] sm:$0xff]
        %v293 = vld [vmem:[%s225 + $0xc8] sm:$0xff]
        %v294 = vld [vmem:[%s225 + $0xd0] sm:$0xff]
        %v295 = vld [vmem:[%s225 + $0xd8] sm:$0xff]
        %v296 = vld [vmem:[%s225 + $0xe0] sm:$0xff]
        %v297 = vld [vmem:[%s225 + $0xe8] sm:$0xff]
        %v298 = vld [vmem:[%s225 + $0xf0] sm:$0xff]
        %v299 = vld [vmem:[%s225 + $0xf8] sm:$0xff]
        %v300 = vld [vmem:[%s225 + $0x100] sm:$0xff]
        %v301 = vld [vmem:[%s225 + $0x108] sm:$0xff]
        %v302 = vld [vmem:[%s225 + $0x110] sm:$0xff]
        %v303 = vld [vmem:[%s225 + $0x118] sm:$0xff]
        %v304 = vld [vmem:[%s225 + $0x120] sm:$0xff]
        %v305 = vld [vmem:[%s225 + $0x128] sm:$0xff]
        %v306 = vld [vmem:[%s225 + $0x130] sm:$0xff]
        %v307 = vld [vmem:[%s225 + $0x138] sm:$0xff]
        %v308 = vld [vmem:[%s225 + $0x140] sm:$0xff]
        %v309 = vld [vmem:[%s225 + $0x148] sm:$0xff]
        %v310 = vld [vmem:[%s225 + $0x150] sm:$0xff]
        %v311 = vld [vmem:[%s225 + $0x158] sm:$0xff]
        %v312 = vld [vmem:[%s225 + $0x160] sm:$0xff]
        %v313 = vld [vmem:[%s225 + $0x168] sm:$0xff]
        %v314 = vld [vmem:[%s225 + $0x170] sm:$0xff]
        %v315 = vld [vmem:[%s225 + $0x178] sm:$0xff]
        %v316 = vld [vmem:[%s225 + $0x180] sm:$0xff]
        %v317 = vld [vmem:[%s225 + $0x188] sm:$0xff]
        %v318 = vld [vmem:[%s225 + $0x190] sm:$0xff]
        %v319 = vld [vmem:[%s225 + $0x198] sm:$0xff]
        %v320 = vld [vmem:[%s225 + $0x1a0] sm:$0xff]
        %v321 = vld [vmem:[%s225 + $0x1a8] sm:$0xff]
        %v322 = vld [vmem:[%s225 + $0x1b0] sm:$0xff]
        %v323 = vld [vmem:[%s225 + $0x1b8] sm:$0xff]
        %v324 = vld [vmem:[%s225 + $0x1c0] sm:$0xff]
        %v325 = vld [vmem:[%s225 + $0x1c8] sm:$0xff]
        %v326 = vld [vmem:[%s225 + $0x1d0] sm:$0xff]
        %v327 = vld [vmem:[%s225 + $0x1d8] sm:$0xff]
        %v328 = vld [vmem:[%s225 + $0x1e0] sm:$0xff]
        %v329 = vld [vmem:[%s225 + $0x1e8] sm:$0xff]
        %v330 = vld [vmem:[%s225 + $0x1f0] sm:$0xff]
        %v331 = vld [vmem:[%s225 + $0x1f8] sm:$0xff]
        %v332 = vld [vmem:[%s225 + $0x200] sm:$0xff]
        %v333 = vld [vmem:[%s225 + $0x208] sm:$0xff]
        %v334 = vld [vmem:[%s225 + $0x210] sm:$0xff]
        %v335 = vld [vmem:[%s225 + $0x218] sm:$0xff]
        %v336 = vld [vmem:[%s225 + $0x220] sm:$0xff]
        %v337 = vld [vmem:[%s225 + $0x228] sm:$0xff]
        %v338 = vld [vmem:[%s225 + $0x230] sm:$0xff]
        %v339 = vld [vmem:[%s225 + $0x238] sm:$0xff]
        %v340 = vld [vmem:[%s225 + $0x240] sm:$0xff]
        %v341 = vld [vmem:[%s225 + $0x248] sm:$0xff]
        %v342 = vld [vmem:[%s225 + $0x250] sm:$0xff]
        %v343 = vld [vmem:[%s225 + $0x258] sm:$0xff]
        %v344 = vld [vmem:[%s225 + $0x260] sm:$0xff]
        %v345 = vld [vmem:[%s225 + $0x268] sm:$0xff]
        %v346 = vld [vmem:[%s225 + $0x270] sm:$0xff]
        %v347 = vld [vmem:[%s225 + $0x278] sm:$0xff]
        %v348 = vld [vmem:[%s225 + $0x280] sm:$0xff]
        %v349 = vld [vmem:[%s225 + $0x288] sm:$0xff]
        %v350 = vld [vmem:[%s225 + $0x290] sm:$0xff]
        %v351 = vld [vmem:[%s225 + $0x298] sm:$0xff]
        %v352 = vld [vmem:[%s225 + $0x2a0] sm:$0xff]
        %v353 = vld [vmem:[%s225 + $0x2a8] sm:$0xff]
        %v354 = vld [vmem:[%s225 + $0x2b0] sm:$0xff]
        %v355 = vld [vmem:[%s225 + $0x2b8] sm:$0xff]
        %v356 = vld [vmem:[%s225 + $0x2c0] sm:$0xff]
        %v357 = vld [vmem:[%s225 + $0x2c8] sm:$0xff]
        %v358 = vld [vmem:[%s225 + $0x2d0] sm:$0xff]
        %v359 = vld [vmem:[%s225 + $0x2d8] sm:$0xff]
        %v360 = vld [vmem:[%s225 + $0x2e0] sm:$0xff]
        %v361 = vld [vmem:[%s225 + $0x2e8] sm:$0xff]
        %v362 = vld [vmem:[%s225 + $0x2f0] sm:$0xff]
        %v363 = vld [vmem:[%s225 + $0x2f8] sm:$0xff]
        %v364 = vld [vmem:[%s225 + $0x300] sm:$0xff]
        %v365 = vld [vmem:[%s225 + $0x308] sm:$0xff]
        %v366 = vld [vmem:[%s225 + $0x310] sm:$0xff]
        %v367 = vld [vmem:[%s225 + $0x318] sm:$0xff]
        %v368 = vld [vmem:[%s225 + $0x320] sm:$0xff]
        %v369 = vld [vmem:[%s225 + $0x328] sm:$0xff]
        %v370 = vld [vmem:[%s225 + $0x330] sm:$0xff]
        %v371 = vld [vmem:[%s225 + $0x338] sm:$0xff]
        %v372 = vld [vmem:[%s225 + $0x340] sm:$0xff]
        %v373 = vld [vmem:[%s225 + $0x348] sm:$0xff]
        %v374 = vld [vmem:[%s225 + $0x350] sm:$0xff]
        %v375 = vld [vmem:[%s225 + $0x358] sm:$0xff]
        %v376 = vld [vmem:[%s225 + $0x360] sm:$0xff]
        %v377 = vld [vmem:[%s225 + $0x368] sm:$0xff]
        %v378 = vld [vmem:[%s225 + $0x370] sm:$0xff]
        %v379 = vld [vmem:[%s225 + $0x378] sm:$0xff]
        %v380 = vld [vmem:[%s225 + $0x380] sm:$0xff]
        %v381 = vld [vmem:[%s225 + $0x388] sm:$0xff]
        %v382 = vld [vmem:[%s225 + $0x390] sm:$0xff]
        %v383 = vld [vmem:[%s225 + $0x398] sm:$0xff]
        %v384 = vld [vmem:[%s225 + $0x3a0] sm:$0xff]
        %v385 = vld [vmem:[%s225 + $0x3a8] sm:$0xff]
        %v386 = vld [vmem:[%s225 + $0x3b0] sm:$0xff]
        %v387 = vld [vmem:[%s225 + $0x3b8] sm:$0xff]
        %v388 = vld [vmem:[%s225 + $0x3c0] sm:$0xff]
        %v389 = vld [vmem:[%s225 + $0x3c8] sm:$0xff]
        %v390 = vld [vmem:[%s225 + $0x3d0] sm:$0xff]
        %v391 = vld [vmem:[%s225 + $0x3d8] sm:$0xff]
        %v392 = vld [vmem:[%s225 + $0x3e0] sm:$0xff]
        %v393 = vld [vmem:[%s225 + $0x3e8] sm:$0xff]
        %v394 = vld [vmem:[%s225 + $0x3f0] sm:$0xff]
        %v395 = vld [vmem:[%s225 + $0x3f8] sm:$0xff]
        %v396 = vld [vmem:[#allocation2] sm:$0xff]
        %v397 = vadd.f32 %v268, %v269
        %398 = vadd.xlane.f32.xlu0 %v397
        %v399 = vpop.xlane.xlu0 %398
        %v400 = vadd.f32 %v270, %v271
        %401 = vadd.xlane.f32.xlu0 %v400
        %v402 = vpop.xlane.xlu0 %401
        %v403 = vadd.f32 %v272, %v273
        %404 = vadd.xlane.f32.xlu0 %v403
        %v405 = vpop.xlane.xlu0 %404
        %v406 = vadd.f32 %v274, %v275
        %407 = vadd.xlane.f32.xlu0 %v406
        %v408 = vpop.xlane.xlu0 %407
        %v409 = vadd.f32 %v276, %v277
        %410 = vadd.xlane.f32.xlu0 %v409
        %v411 = vpop.xlane.xlu0 %410
        %v412 = vadd.f32 %v278, %v279
        %413 = vadd.xlane.f32.xlu0 %v412
        %v414 = vpop.xlane.xlu0 %413
        %v415 = vadd.f32 %v280, %v281
        %416 = vadd.xlane.f32.xlu0 %v415
        %v417 = vpop.xlane.xlu0 %416
        %v418 = vadd.f32 %v282, %v283
        %419 = vadd.xlane.f32.xlu0 %v418
        %v420 = vpop.xlane.xlu0 %419
        %v421 = vadd.f32 %v284, %v285
        %422 = vadd.xlane.f32.xlu0 %v421
        %v423 = vpop.xlane.xlu0 %422
        %v424 = vadd.f32 %v286, %v287
        %425 = vadd.xlane.f32.xlu0 %v424
        %v426 = vpop.xlane.xlu0 %425
        %v427 = vadd.f32 %v288, %v289
        %428 = vadd.xlane.f32.xlu0 %v427
        %v429 = vpop.xlane.xlu0 %428
        %v430 = vadd.f32 %v290, %v291
        %431 = vadd.xlane.f32.xlu0 %v430
        %v432 = vpop.xlane.xlu0 %431
        %v433 = vadd.f32 %v292, %v293
        %434 = vadd.xlane.f32.xlu0 %v433
        %v435 = vpop.xlane.xlu0 %434
        %v436 = vadd.f32 %v294, %v295
        %437 = vadd.xlane.f32.xlu0 %v436
        %v438 = vpop.xlane.xlu0 %437
        %v439 = vadd.f32 %v296, %v297
        %440 = vadd.xlane.f32.xlu0 %v439
        %v441 = vpop.xlane.xlu0 %440
        %v442 = vadd.f32 %v298, %v299
        %443 = vadd.xlane.f32.xlu0 %v442
        %v444 = vpop.xlane.xlu0 %443
        %v445 = vadd.f32 %v300, %v301
        %446 = vadd.xlane.f32.xlu0 %v445
        %v447 = vpop.xlane.xlu0 %446
        %v448 = vadd.f32 %v302, %v303
        %449 = vadd.xlane.f32.xlu0 %v448
        %v450 = vpop.xlane.xlu0 %449
        %v451 = vadd.f32 %v304, %v305
        %452 = vadd.xlane.f32.xlu0 %v451
        %v453 = vpop.xlane.xlu0 %452
        %v454 = vadd.f32 %v306, %v307
        %455 = vadd.xlane.f32.xlu0 %v454
        %v456 = vpop.xlane.xlu0 %455
        %v457 = vadd.f32 %v308, %v309
        %458 = vadd.xlane.f32.xlu0 %v457
        %v459 = vpop.xlane.xlu0 %458
        %v460 = vadd.f32 %v310, %v311
        %461 = vadd.xlane.f32.xlu0 %v460
        %v462 = vpop.xlane.xlu0 %461
        %v463 = vadd.f32 %v312, %v313
        %464 = vadd.xlane.f32.xlu0 %v463
        %v465 = vpop.xlane.xlu0 %464
        %v466 = vadd.f32 %v314, %v315
        %467 = vadd.xlane.f32.xlu0 %v466
        %v468 = vpop.xlane.xlu0 %467
        %v469 = vadd.f32 %v316, %v317
        %470 = vadd.xlane.f32.xlu0 %v469
        %v471 = vpop.xlane.xlu0 %470
        %v472 = vadd.f32 %v318, %v319
        %473 = vadd.xlane.f32.xlu0 %v472
        %v474 = vpop.xlane.xlu0 %473
        %v475 = vadd.f32 %v320, %v321
        %476 = vadd.xlane.f32.xlu0 %v475
        %v477 = vpop.xlane.xlu0 %476
        %v478 = vadd.f32 %v322, %v323
        %479 = vadd.xlane.f32.xlu0 %v478
        %v480 = vpop.xlane.xlu0 %479
        %v481 = vadd.f32 %v324, %v325
        %482 = vadd.xlane.f32.xlu0 %v481
        %v483 = vpop.xlane.xlu0 %482
        %v484 = vadd.f32 %v326, %v327
        %485 = vadd.xlane.f32.xlu0 %v484
        %v486 = vpop.xlane.xlu0 %485
        %v487 = vadd.f32 %v328, %v329
        %488 = vadd.xlane.f32.xlu0 %v487
        %v489 = vpop.xlane.xlu0 %488
        %v490 = vadd.f32 %v330, %v331
        %491 = vadd.xlane.f32.xlu0 %v490
        %v492 = vpop.xlane.xlu0 %491
        %v493 = vadd.f32 %v332, %v333
        %494 = vadd.xlane.f32.xlu0 %v493
        %v495 = vpop.xlane.xlu0 %494
        %v496 = vadd.f32 %v334, %v335
        %497 = vadd.xlane.f32.xlu0 %v496
        %v498 = vpop.xlane.xlu0 %497
        %v499 = vadd.f32 %v336, %v337
        %500 = vadd.xlane.f32.xlu0 %v499
        %v501 = vpop.xlane.xlu0 %500
        %v502 = vadd.f32 %v338, %v339
        %503 = vadd.xlane.f32.xlu0 %v502
        %v504 = vpop.xlane.xlu0 %503
        %v505 = vadd.f32 %v340, %v341
        %506 = vadd.xlane.f32.xlu0 %v505
        %v507 = vpop.xlane.xlu0 %506
        %v508 = vadd.f32 %v342, %v343
        %509 = vadd.xlane.f32.xlu0 %v508
        %v510 = vpop.xlane.xlu0 %509
        %v511 = vadd.f32 %v344, %v345
        %512 = vadd.xlane.f32.xlu0 %v511
        %v513 = vpop.xlane.xlu0 %512
        %v514 = vadd.f32 %v346, %v347
        %515 = vadd.xlane.f32.xlu0 %v514
        %v516 = vpop.xlane.xlu0 %515
        %v517 = vadd.f32 %v348, %v349
        %518 = vadd.xlane.f32.xlu0 %v517
        %v519 = vpop.xlane.xlu0 %518
        %v520 = vadd.f32 %v350, %v351
        %521 = vadd.xlane.f32.xlu0 %v520
        %v522 = vpop.xlane.xlu0 %521
        %v523 = vadd.f32 %v352, %v353
        %524 = vadd.xlane.f32.xlu0 %v523
        %v525 = vpop.xlane.xlu0 %524
        %v526 = vadd.f32 %v354, %v355
        %527 = vadd.xlane.f32.xlu0 %v526
        %v528 = vpop.xlane.xlu0 %527
        %v529 = vadd.f32 %v356, %v357
        %530 = vadd.xlane.f32.xlu0 %v529
        %v531 = vpop.xlane.xlu0 %530
        %v532 = vadd.f32 %v358, %v359
        %533 = vadd.xlane.f32.xlu0 %v532
        %v534 = vpop.xlane.xlu0 %533
        %v535 = vadd.f32 %v360, %v361
        %536 = vadd.xlane.f32.xlu0 %v535
        %v537 = vpop.xlane.xlu0 %536
        %v538 = vadd.f32 %v362, %v363
        %539 = vadd.xlane.f32.xlu0 %v538
        %v540 = vpop.xlane.xlu0 %539
        %v541 = vadd.f32 %v364, %v365
        %542 = vadd.xlane.f32.xlu0 %v541
        %v543 = vpop.xlane.xlu0 %542
        %v544 = vadd.f32 %v366, %v367
        %545 = vadd.xlane.f32.xlu0 %v544
        %v546 = vpop.xlane.xlu0 %545
        %v547 = vadd.f32 %v368, %v369
        %548 = vadd.xlane.f32.xlu0 %v547
        %v549 = vpop.xlane.xlu0 %548
        %v550 = vadd.f32 %v370, %v371
        %551 = vadd.xlane.f32.xlu0 %v550
        %v552 = vpop.xlane.xlu0 %551
        %v553 = vadd.f32 %v372, %v373
        %554 = vadd.xlane.f32.xlu0 %v553
        %v555 = vpop.xlane.xlu0 %554
        %v556 = vadd.f32 %v374, %v375
        %557 = vadd.xlane.f32.xlu0 %v556
        %v558 = vpop.xlane.xlu0 %557
        %v559 = vadd.f32 %v376, %v377
        %560 = vadd.xlane.f32.xlu0 %v559
        %v561 = vpop.xlane.xlu0 %560
        %v562 = vadd.f32 %v378, %v379
        %563 = vadd.xlane.f32.xlu0 %v562
        %v564 = vpop.xlane.xlu0 %563
        %v565 = vadd.f32 %v380, %v381
        %566 = vadd.xlane.f32.xlu0 %v565
        %v567 = vpop.xlane.xlu0 %566
        %v568 = vadd.f32 %v382, %v383
        %569 = vadd.xlane.f32.xlu0 %v568
        %v570 = vpop.xlane.xlu0 %569
        %v571 = vadd.f32 %v384, %v385
        %572 = vadd.xlane.f32.xlu0 %v571
        %v573 = vpop.xlane.xlu0 %572
        %v574 = vadd.f32 %v386, %v387
        %575 = vadd.xlane.f32.xlu0 %v574
        %v576 = vpop.xlane.xlu0 %575
        %v577 = vadd.f32 %v388, %v389
        %578 = vadd.xlane.f32.xlu0 %v577
        %v579 = vpop.xlane.xlu0 %578
        %v580 = vadd.f32 %v390, %v391
        %581 = vadd.xlane.f32.xlu0 %v580
        %v582 = vpop.xlane.xlu0 %581
        %v583 = vadd.f32 %v392, %v393
        %584 = vadd.xlane.f32.xlu0 %v583
        %v585 = vpop.xlane.xlu0 %584
        %v586 = vadd.f32 %v394, %v395
        %587 = vadd.xlane.f32.xlu0 %v586
        %v588 = vpop.xlane.xlu0 %587
        %v653 = vlaneseq
        %v654 = vand.u32 %v653, 127
        %v655 = vlaneseq
        %v656 = vshrl.u32 %v655, 7
        %v657 = vsub.s32 %v654, %v656
        %v658 = vrot.slane %v399, %v657
        %v659 = vadd.s32 %v654, 4294967288
        %v660 = vlaneseq
        %v661 = vshrl.u32 %v660, 7
        %v662 = vsub.s32 %v659, %v661
        %v663 = vrot.slane %v402, %v662
        %vm664 = vcmask 130112
        %v665 = vsel %vm664, %v663, %v658
        %v666 = vadd.s32 %v654, 4294967280
        %v667 = vlaneseq
        %v668 = vshrl.u32 %v667, 7
        %v669 = vsub.s32 %v666, %v668
        %v670 = vrot.slane %v405, %v669
        %vm671 = vcmask 195712
        %v672 = vsel %vm671, %v670, %v665
        %v673 = vadd.s32 %v654, 4294967272
        %v674 = vlaneseq
        %v675 = vshrl.u32 %v674, 7
        %v676 = vsub.s32 %v673, %v675
        %v677 = vrot.slane %v408, %v676
        %vm678 = vcmask 261312
        %v679 = vsel %vm678, %v677, %v672
        %v680 = vadd.s32 %v654, 4294967264
        %v681 = vlaneseq
        %v682 = vshrl.u32 %v681, 7
        %v683 = vsub.s32 %v680, %v682
        %v684 = vrot.slane %v411, %v683
        %vm685 = vcmask 326912
        %v686 = vsel %vm685, %v684, %v679
        %v687 = vadd.s32 %v654, 4294967256
        %v688 = vlaneseq
        %v689 = vshrl.u32 %v688, 7
        %v690 = vsub.s32 %v687, %v689
        %v691 = vrot.slane %v414, %v690
        %vm692 = vcmask 392512
        %v693 = vsel %vm692, %v691, %v686
        %v694 = vadd.s32 %v654, 4294967248
        %v695 = vlaneseq
        %v696 = vshrl.u32 %v695, 7
        %v697 = vsub.s32 %v694, %v696
        %v698 = vrot.slane %v417, %v697
        %vm699 = vcmask 458112
        %v700 = vsel %vm699, %v698, %v693
        %v701 = vadd.s32 %v654, 4294967240
        %v702 = vlaneseq
        %v703 = vshrl.u32 %v702, 7
        %v704 = vsub.s32 %v701, %v703
        %v705 = vrot.slane %v420, %v704
        %vm706 = vcmask 523712
        %v707 = vsel %vm706, %v705, %v700
        %v708 = vlaneseq
        %v709 = vshrl.u32 %v708, 7
        %v710 = vsub.s32 %v654, %v709
        %v711 = vrot.slane %v423, %v710
        %v712 = vlaneseq
        %v713 = vshrl.u32 %v712, 7
        %v714 = vsub.s32 %v659, %v713
        %v715 = vrot.slane %v426, %v714
        %v716 = vsel %vm664, %v715, %v711
        %v717 = vlaneseq
        %v718 = vshrl.u32 %v717, 7
        %v719 = vsub.s32 %v666, %v718
        %v720 = vrot.slane %v429, %v719
        %v721 = vsel %vm671, %v720, %v716
        %v722 = vlaneseq
        %v723 = vshrl.u32 %v722, 7
        %v724 = vsub.s32 %v673, %v723
        %v725 = vrot.slane %v432, %v724
        %v726 = vsel %vm678, %v725, %v721
        %v727 = vlaneseq
        %v728 = vshrl.u32 %v727, 7
        %v729 = vsub.s32 %v680, %v728
        %v730 = vrot.slane %v435, %v729
        %v731 = vsel %vm685, %v730, %v726
        %v732 = vlaneseq
        %v733 = vshrl.u32 %v732, 7
        %v734 = vsub.s32 %v687, %v733
        %v735 = vrot.slane %v438, %v734
        %v736 = vsel %vm692, %v735, %v731
        %v737 = vlaneseq
        %v738 = vshrl.u32 %v737, 7
        %v739 = vsub.s32 %v694, %v738
        %v740 = vrot.slane %v441, %v739
        %v741 = vsel %vm699, %v740, %v736
        %v742 = vlaneseq
        %v743 = vshrl.u32 %v742, 7
        %v744 = vsub.s32 %v701, %v743
        %v745 = vrot.slane %v444, %v744
        %v746 = vsel %vm706, %v745, %v741
        %v747 = vlaneseq
        %v748 = vshrl.u32 %v747, 7
        %v749 = vsub.s32 %v654, %v748
        %v750 = vrot.slane %v447, %v749
        %v751 = vlaneseq
        %v752 = vshrl.u32 %v751, 7
        %v753 = vsub.s32 %v659, %v752
        %v754 = vrot.slane %v450, %v753
        %v755 = vsel %vm664, %v754, %v750
        %v756 = vlaneseq
        %v757 = vshrl.u32 %v756, 7
        %v758 = vsub.s32 %v666, %v757
        %v759 = vrot.slane %v453, %v758
        %v760 = vsel %vm671, %v759, %v755
        %v761 = vlaneseq
        %v762 = vshrl.u32 %v761, 7
        %v763 = vsub.s32 %v673, %v762
        %v764 = vrot.slane %v456, %v763
        %v765 = vsel %vm678, %v764, %v760
        %v766 = vlaneseq
        %v767 = vshrl.u32 %v766, 7
        %v768 = vsub.s32 %v680, %v767
        %v769 = vrot.slane %v459, %v768
        %v770 = vsel %vm685, %v769, %v765
        %v771 = vlaneseq
        %v772 = vshrl.u32 %v771, 7
        %v773 = vsub.s32 %v687, %v772
        %v774 = vrot.slane %v462, %v773
        %v775 = vsel %vm692, %v774, %v770
        %v776 = vlaneseq
        %v777 = vshrl.u32 %v776, 7
        %v778 = vsub.s32 %v694, %v777
        %v779 = vrot.slane %v465, %v778
        %v780 = vsel %vm699, %v779, %v775
        %v781 = vlaneseq
        %v782 = vshrl.u32 %v781, 7
        %v783 = vsub.s32 %v701, %v782
        %v784 = vrot.slane %v468, %v783
        %v785 = vsel %vm706, %v784, %v780
        %v786 = vlaneseq
        %v787 = vshrl.u32 %v786, 7
        %v788 = vsub.s32 %v654, %v787
        %v789 = vrot.slane %v471, %v788
        %v790 = vlaneseq
        %v791 = vshrl.u32 %v790, 7
        %v792 = vsub.s32 %v659, %v791
        %v793 = vrot.slane %v474, %v792
        %v794 = vsel %vm664, %v793, %v789
        %v795 = vlaneseq
        %v796 = vshrl.u32 %v795, 7
        %v797 = vsub.s32 %v666, %v796
        %v798 = vrot.slane %v477, %v797
        %v799 = vsel %vm671, %v798, %v794
        %v800 = vlaneseq
        %v801 = vshrl.u32 %v800, 7
        %v802 = vsub.s32 %v673, %v801
        %v803 = vrot.slane %v480, %v802
        %v804 = vsel %vm678, %v803, %v799
        %v805 = vlaneseq
        %v806 = vshrl.u32 %v805, 7
        %v807 = vsub.s32 %v680, %v806
        %v808 = vrot.slane %v483, %v807
        %v809 = vsel %vm685, %v808, %v804
        %v810 = vlaneseq
        %v811 = vshrl.u32 %v810, 7
        %v812 = vsub.s32 %v687, %v811
        %v813 = vrot.slane %v486, %v812
        %v814 = vsel %vm692, %v813, %v809
        %v815 = vlaneseq
        %v816 = vshrl.u32 %v815, 7
        %v817 = vsub.s32 %v694, %v816
        %v818 = vrot.slane %v489, %v817
        %v819 = vsel %vm699, %v818, %v814
        %v820 = vlaneseq
        %v821 = vshrl.u32 %v820, 7
        %v822 = vsub.s32 %v701, %v821
        %v823 = vrot.slane %v492, %v822
        %v824 = vsel %vm706, %v823, %v819
        %v825 = vlaneseq
        %v826 = vshrl.u32 %v825, 7
        %v827 = vsub.s32 %v654, %v826
        %v828 = vrot.slane %v495, %v827
        %v829 = vlaneseq
        %v830 = vshrl.u32 %v829, 7
        %v831 = vsub.s32 %v659, %v830
        %v832 = vrot.slane %v498, %v831
        %v833 = vsel %vm664, %v832, %v828
        %v834 = vlaneseq
        %v835 = vshrl.u32 %v834, 7
        %v836 = vsub.s32 %v666, %v835
        %v837 = vrot.slane %v501, %v836
        %v838 = vsel %vm671, %v837, %v833
        %v839 = vlaneseq
        %v840 = vshrl.u32 %v839, 7
        %v841 = vsub.s32 %v673, %v840
        %v842 = vrot.slane %v504, %v841
        %v843 = vsel %vm678, %v842, %v838
        %v844 = vlaneseq
        %v845 = vshrl.u32 %v844, 7
        %v846 = vsub.s32 %v680, %v845
        %v847 = vrot.slane %v507, %v846
        %v848 = vsel %vm685, %v847, %v843
        %v849 = vlaneseq
        %v850 = vshrl.u32 %v849, 7
        %v851 = vsub.s32 %v687, %v850
        %v852 = vrot.slane %v510, %v851
        %v853 = vsel %vm692, %v852, %v848
        %v854 = vlaneseq
        %v855 = vshrl.u32 %v854, 7
        %v856 = vsub.s32 %v694, %v855
        %v857 = vrot.slane %v513, %v856
        %v858 = vsel %vm699, %v857, %v853
        %v859 = vlaneseq
        %v860 = vshrl.u32 %v859, 7
        %v861 = vsub.s32 %v701, %v860
        %v862 = vrot.slane %v516, %v861
        %v863 = vsel %vm706, %v862, %v858
        %v864 = vlaneseq
        %v865 = vshrl.u32 %v864, 7
        %v866 = vsub.s32 %v654, %v865
        %v867 = vrot.slane %v519, %v866
        %v868 = vlaneseq
        %v869 = vshrl.u32 %v868, 7
        %v870 = vsub.s32 %v659, %v869
        %v871 = vrot.slane %v522, %v870
        %v872 = vsel %vm664, %v871, %v867
        %v873 = vlaneseq
        %v874 = vshrl.u32 %v873, 7
        %v875 = vsub.s32 %v666, %v874
        %v876 = vrot.slane %v525, %v875
        %v877 = vsel %vm671, %v876, %v872
        %v878 = vlaneseq
        %v879 = vshrl.u32 %v878, 7
        %v880 = vsub.s32 %v673, %v879
        %v881 = vrot.slane %v528, %v880
        %v882 = vsel %vm678, %v881, %v877
        %v883 = vlaneseq
        %v884 = vshrl.u32 %v883, 7
        %v885 = vsub.s32 %v680, %v884
        %v886 = vrot.slane %v531, %v885
        %v887 = vsel %vm685, %v886, %v882
        %v888 = vlaneseq
        %v889 = vshrl.u32 %v888, 7
        %v890 = vsub.s32 %v687, %v889
        %v891 = vrot.slane %v534, %v890
        %v892 = vsel %vm692, %v891, %v887
        %v893 = vlaneseq
        %v894 = vshrl.u32 %v893, 7
        %v895 = vsub.s32 %v694, %v894
        %v896 = vrot.slane %v537, %v895
        %v897 = vsel %vm699, %v896, %v892
        %v898 = vlaneseq
        %v899 = vshrl.u32 %v898, 7
        %v900 = vsub.s32 %v701, %v899
        %v901 = vrot.slane %v540, %v900
        %v902 = vsel %vm706, %v901, %v897
        %v903 = vlaneseq
        %v904 = vshrl.u32 %v903, 7
        %v905 = vsub.s32 %v654, %v904
        %v906 = vrot.slane %v543, %v905
        %v907 = vlaneseq
        %v908 = vshrl.u32 %v907, 7
        %v909 = vsub.s32 %v659, %v908
        %v910 = vrot.slane %v546, %v909
        %v911 = vsel %vm664, %v910, %v906
        %v912 = vlaneseq
        %v913 = vshrl.u32 %v912, 7
        %v914 = vsub.s32 %v666, %v913
        %v915 = vrot.slane %v549, %v914
        %v916 = vsel %vm671, %v915, %v911
        %v917 = vlaneseq
        %v918 = vshrl.u32 %v917, 7
        %v919 = vsub.s32 %v673, %v918
        %v920 = vrot.slane %v552, %v919
        %v921 = vsel %vm678, %v920, %v916
        %v922 = vlaneseq
        %v923 = vshrl.u32 %v922, 7
        %v924 = vsub.s32 %v680, %v923
        %v925 = vrot.slane %v555, %v924
        %v926 = vsel %vm685, %v925, %v921
        %v927 = vlaneseq
        %v928 = vshrl.u32 %v927, 7
        %v929 = vsub.s32 %v687, %v928
        %v930 = vrot.slane %v558, %v929
        %v931 = vsel %vm692, %v930, %v926
        %v932 = vlaneseq
        %v933 = vshrl.u32 %v932, 7
        %v934 = vsub.s32 %v694, %v933
        %v935 = vrot.slane %v561, %v934
        %v936 = vsel %vm699, %v935, %v931
        %v937 = vlaneseq
        %v938 = vshrl.u32 %v937, 7
        %v939 = vsub.s32 %v701, %v938
        %v940 = vrot.slane %v564, %v939
        %v941 = vsel %vm706, %v940, %v936
        %v942 = vlaneseq
        %v943 = vshrl.u32 %v942, 7
        %v944 = vsub.s32 %v654, %v943
        %v945 = vrot.slane %v567, %v944
        %v946 = vlaneseq
        %v947 = vshrl.u32 %v946, 7
        %v948 = vsub.s32 %v659, %v947
        %v949 = vrot.slane %v570, %v948
        %v950 = vsel %vm664, %v949, %v945
        %v951 = vlaneseq
        %v952 = vshrl.u32 %v951, 7
        %v953 = vsub.s32 %v666, %v952
        %v954 = vrot.slane %v573, %v953
        %v955 = vsel %vm671, %v954, %v950
        %v956 = vlaneseq
        %v957 = vshrl.u32 %v956, 7
        %v958 = vsub.s32 %v673, %v957
        %v959 = vrot.slane %v576, %v958
        %v960 = vsel %vm678, %v959, %v955
        %v961 = vlaneseq
        %v962 = vshrl.u32 %v961, 7
        %v963 = vsub.s32 %v680, %v962
        %v964 = vrot.slane %v579, %v963
        %v965 = vsel %vm685, %v964, %v960
        %v966 = vlaneseq
        %v967 = vshrl.u32 %v966, 7
        %v968 = vsub.s32 %v687, %v967
        %v969 = vrot.slane %v582, %v968
        %v970 = vsel %vm692, %v969, %v965
        %v971 = vlaneseq
        %v972 = vshrl.u32 %v971, 7
        %v973 = vsub.s32 %v694, %v972
        %v974 = vrot.slane %v585, %v973
        %v975 = vsel %vm699, %v974, %v970
        %v976 = vlaneseq
        %v977 = vshrl.u32 %v976, 7
        %v978 = vsub.s32 %v701, %v977
        %v979 = vrot.slane %v588, %v978
        %v980 = vsel %vm706, %v979, %v975
        %vm981 = vcmask 1041409
        %v982 = vsel %vm981, %v746, %v707
        %vm983 = vcmask 1042434
        %v984 = vsel %vm983, %v785, %v982
        %vm985 = vcmask 1043459
        %v986 = vsel %vm985, %v824, %v984
        %vm987 = vcmask 1044484
        %v988 = vsel %vm987, %v863, %v986
        %vm989 = vcmask 1045509
        %v990 = vsel %vm989, %v902, %v988
        %vm991 = vcmask 1046534
        %v992 = vsel %vm991, %v941, %v990
        %vm993 = vcmask 1047559
        %v994 = vsel %vm993, %v980, %v992
        %v996 = vadd.f32 %v396, %v994
        %vm997 = vcmask 523264
        %998 = vst.msk [vmem:[#allocation2] sm:$0xff] %vm997, %v996
        %v999 = vld [vmem:[#allocation3] sm:$0xff]
        %v1000 = vmul.f32 %v268, %v268
        %v1001 = vmul.f32 %v269, %v269
        %v1002 = vmul.f32 %v270, %v270
        %v1003 = vmul.f32 %v271, %v271
        %v1004 = vmul.f32 %v272, %v272
        %v1005 = vmul.f32 %v273, %v273
        %v1006 = vmul.f32 %v274, %v274
        %v1007 = vmul.f32 %v275, %v275
        %v1008 = vmul.f32 %v276, %v276
        %v1009 = vmul.f32 %v277, %v277
        %v1010 = vmul.f32 %v278, %v278
        %v1011 = vmul.f32 %v279, %v279
        %v1012 = vmul.f32 %v280, %v280
        %v1013 = vmul.f32 %v281, %v281
        %v1014 = vmul.f32 %v282, %v282
        %v1015 = vmul.f32 %v283, %v283
        %v1016 = vmul.f32 %v284, %v284
        %v1017 = vmul.f32 %v285, %v285
        %v1018 = vmul.f32 %v286, %v286
        %v1019 = vmul.f32 %v287, %v287
        %v1020 = vmul.f32 %v288, %v288
        %v1021 = vmul.f32 %v289, %v289
        %v1022 = vmul.f32 %v290, %v290
        %v1023 = vmul.f32 %v291, %v291
        %v1024 = vmul.f32 %v292, %v292
        %v1025 = vmul.f32 %v293, %v293
        %v1026 = vmul.f32 %v294, %v294
        %v1027 = vmul.f32 %v295, %v295
        %v1028 = vmul.f32 %v296, %v296
        %v1029 = vmul.f32 %v297, %v297
        %v1030 = vmul.f32 %v298, %v298
        %v1031 = vmul.f32 %v299, %v299
        %v1032 = vmul.f32 %v300, %v300
        %v1033 = vmul.f32 %v301, %v301
        %v1034 = vmul.f32 %v302, %v302
        %v1035 = vmul.f32 %v303, %v303
        %v1036 = vmul.f32 %v304, %v304
        %v1037 = vmul.f32 %v305, %v305
        %v1038 = vmul.f32 %v306, %v306
        %v1039 = vmul.f32 %v307, %v307
        %v1040 = vmul.f32 %v308, %v308
        %v1041 = vmul.f32 %v309, %v309
        %v1042 = vmul.f32 %v310, %v310
        %v1043 = vmul.f32 %v311, %v311
        %v1044 = vmul.f32 %v312, %v312
        %v1045 = vmul.f32 %v313, %v313
        %v1046 = vmul.f32 %v314, %v314
        %v1047 = vmul.f32 %v315, %v315
        %v1048 = vmul.f32 %v316, %v316
        %v1049 = vmul.f32 %v317, %v317
        %v1050 = vmul.f32 %v318, %v318
        %v1051 = vmul.f32 %v319, %v319
        %v1052 = vmul.f32 %v320, %v320
        %v1053 = vmul.f32 %v321, %v321
        %v1054 = vmul.f32 %v322, %v322
        %v1055 = vmul.f32 %v323, %v323
        %v1056 = vmul.f32 %v324, %v324
        %v1057 = vmul.f32 %v325, %v325
        %v1058 = vmul.f32 %v326, %v326
        %v1059 = vmul.f32 %v327, %v327
        %v1060 = vmul.f32 %v328, %v328
        %v1061 = vmul.f32 %v329, %v329
        %v1062 = vmul.f32 %v330, %v330
        %v1063 = vmul.f32 %v331, %v331
        %v1064 = vmul.f32 %v332, %v332
        %v1065 = vmul.f32 %v333, %v333
        %v1066 = vmul.f32 %v334, %v334
        %v1067 = vmul.f32 %v335, %v335
        %v1068 = vmul.f32 %v336, %v336
        %v1069 = vmul.f32 %v337, %v337
        %v1070 = vmul.f32 %v338, %v338
        %v1071 = vmul.f32 %v339, %v339
        %v1072 = vmul.f32 %v340, %v340
        %v1073 = vmul.f32 %v341, %v341
        %v1074 = vmul.f32 %v342, %v342
        %v1075 = vmul.f32 %v343, %v343
        %v1076 = vmul.f32 %v344, %v344
        %v1077 = vmul.f32 %v345, %v345
        %v1078 = vmul.f32 %v346, %v346
        %v1079 = vmul.f32 %v347, %v347
        %v1080 = vmul.f32 %v348, %v348
        %v1081 = vmul.f32 %v349, %v349
        %v1082 = vmul.f32 %v350, %v350
        %v1083 = vmul.f32 %v351, %v351
        %v1084 = vmul.f32 %v352, %v352
        %v1085 = vmul.f32 %v353, %v353
        %v1086 = vmul.f32 %v354, %v354
        %v1087 = vmul.f32 %v355, %v355
        %v1088 = vmul.f32 %v356, %v356
        %v1089 = vmul.f32 %v357, %v357
        %v1090 = vmul.f32 %v358, %v358
        %v1091 = vmul.f32 %v359, %v359
        %v1092 = vmul.f32 %v360, %v360
        %v1093 = vmul.f32 %v361, %v361
        %v1094 = vmul.f32 %v362, %v362
        %v1095 = vmul.f32 %v363, %v363
        %v1096 = vmul.f32 %v364, %v364
        %v1097 = vmul.f32 %v365, %v365
        %v1098 = vmul.f32 %v366, %v366
        %v1099 = vmul.f32 %v367, %v367
        %v1100 = vmul.f32 %v368, %v368
        %v1101 = vmul.f32 %v369, %v369
        %v1102 = vmul.f32 %v370, %v370
        %v1103 = vmul.f32 %v371, %v371
        %v1104 = vmul.f32 %v372, %v372
        %v1105 = vmul.f32 %v373, %v373
        %v1106 = vmul.f32 %v374, %v374
        %v1107 = vmul.f32 %v375, %v375
        %v1108 = vmul.f32 %v376, %v376
        %v1109 = vmul.f32 %v377, %v377
        %v1110 = vmul.f32 %v378, %v378
        %v1111 = vmul.f32 %v379, %v379
        %v1112 = vmul.f32 %v380, %v380
        %v1113 = vmul.f32 %v381, %v381
        %v1114 = vmul.f32 %v382, %v382
        %v1115 = vmul.f32 %v383, %v383
        %v1116 = vmul.f32 %v384, %v384
        %v1117 = vmul.f32 %v385, %v385
        %v1118 = vmul.f32 %v386, %v386
        %v1119 = vmul.f32 %v387, %v387
        %v1120 = vmul.f32 %v388, %v388
        %v1121 = vmul.f32 %v389, %v389
        %v1122 = vmul.f32 %v390, %v390
        %v1123 = vmul.f32 %v391, %v391
        %v1124 = vmul.f32 %v392, %v392
        %v1125 = vmul.f32 %v393, %v393
        %v1126 = vmul.f32 %v394, %v394
        %v1127 = vmul.f32 %v395, %v395
        %v1128 = vadd.f32 %v1000, %v1001
        %1129 = vadd.xlane.f32.xlu0 %v1128
        %v1130 = vpop.xlane.xlu0 %1129
        %v1131 = vadd.f32 %v1002, %v1003
        %1132 = vadd.xlane.f32.xlu0 %v1131
        %v1133 = vpop.xlane.xlu0 %1132
        %v1134 = vadd.f32 %v1004, %v1005
        %1135 = vadd.xlane.f32.xlu0 %v1134
        %v1136 = vpop.xlane.xlu0 %1135
        %v1137 = vadd.f32 %v1006, %v1007
        %1138 = vadd.xlane.f32.xlu0 %v1137
        %v1139 = vpop.xlane.xlu0 %1138
        %v1140 = vadd.f32 %v1008, %v1009
        %1141 = vadd.xlane.f32.xlu0 %v1140
        %v1142 = vpop.xlane.xlu0 %1141
        %v1143 = vadd.f32 %v1010, %v1011
        %1144 = vadd.xlane.f32.xlu0 %v1143
        %v1145 = vpop.xlane.xlu0 %1144
        %v1146 = vadd.f32 %v1012, %v1013
        %1147 = vadd.xlane.f32.xlu0 %v1146
        %v1148 = vpop.xlane.xlu0 %1147
        %v1149 = vadd.f32 %v1014, %v1015
        %1150 = vadd.xlane.f32.xlu0 %v1149
        %v1151 = vpop.xlane.xlu0 %1150
        %v1152 = vadd.f32 %v1016, %v1017
        %1153 = vadd.xlane.f32.xlu0 %v1152
        %v1154 = vpop.xlane.xlu0 %1153
        %v1155 = vadd.f32 %v1018, %v1019
        %1156 = vadd.xlane.f32.xlu0 %v1155
        %v1157 = vpop.xlane.xlu0 %1156
        %v1158 = vadd.f32 %v1020, %v1021
        %1159 = vadd.xlane.f32.xlu0 %v1158
        %v1160 = vpop.xlane.xlu0 %1159
        %v1161 = vadd.f32 %v1022, %v1023
        %1162 = vadd.xlane.f32.xlu0 %v1161
        %v1163 = vpop.xlane.xlu0 %1162
        %v1164 = vadd.f32 %v1024, %v1025
        %1165 = vadd.xlane.f32.xlu0 %v1164
        %v1166 = vpop.xlane.xlu0 %1165
        %v1167 = vadd.f32 %v1026, %v1027
        %1168 = vadd.xlane.f32.xlu0 %v1167
        %v1169 = vpop.xlane.xlu0 %1168
        %v1170 = vadd.f32 %v1028, %v1029
        %1171 = vadd.xlane.f32.xlu0 %v1170
        %v1172 = vpop.xlane.xlu0 %1171
        %v1173 = vadd.f32 %v1030, %v1031
        %1174 = vadd.xlane.f32.xlu0 %v1173
        %v1175 = vpop.xlane.xlu0 %1174
        %v1176 = vadd.f32 %v1032, %v1033
        %1177 = vadd.xlane.f32.xlu0 %v1176
        %v1178 = vpop.xlane.xlu0 %1177
        %v1179 = vadd.f32 %v1034, %v1035
        %1180 = vadd.xlane.f32.xlu0 %v1179
        %v1181 = vpop.xlane.xlu0 %1180
        %v1182 = vadd.f32 %v1036, %v1037
        %1183 = vadd.xlane.f32.xlu0 %v1182
        %v1184 = vpop.xlane.xlu0 %1183
        %v1185 = vadd.f32 %v1038, %v1039
        %1186 = vadd.xlane.f32.xlu0 %v1185
        %v1187 = vpop.xlane.xlu0 %1186
        %v1188 = vadd.f32 %v1040, %v1041
        %1189 = vadd.xlane.f32.xlu0 %v1188
        %v1190 = vpop.xlane.xlu0 %1189
        %v1191 = vadd.f32 %v1042, %v1043
        %1192 = vadd.xlane.f32.xlu0 %v1191
        %v1193 = vpop.xlane.xlu0 %1192
        %v1194 = vadd.f32 %v1044, %v1045
        %1195 = vadd.xlane.f32.xlu0 %v1194
        %v1196 = vpop.xlane.xlu0 %1195
        %v1197 = vadd.f32 %v1046, %v1047
        %1198 = vadd.xlane.f32.xlu0 %v1197
        %v1199 = vpop.xlane.xlu0 %1198
        %v1200 = vadd.f32 %v1048, %v1049
        %1201 = vadd.xlane.f32.xlu0 %v1200
        %v1202 = vpop.xlane.xlu0 %1201
        %v1203 = vadd.f32 %v1050, %v1051
        %1204 = vadd.xlane.f32.xlu0 %v1203
        %v1205 = vpop.xlane.xlu0 %1204
        %v1206 = vadd.f32 %v1052, %v1053
        %1207 = vadd.xlane.f32.xlu0 %v1206
        %v1208 = vpop.xlane.xlu0 %1207
        %v1209 = vadd.f32 %v1054, %v1055
        %1210 = vadd.xlane.f32.xlu0 %v1209
        %v1211 = vpop.xlane.xlu0 %1210
        %v1212 = vadd.f32 %v1056, %v1057
        %1213 = vadd.xlane.f32.xlu0 %v1212
        %v1214 = vpop.xlane.xlu0 %1213
        %v1215 = vadd.f32 %v1058, %v1059
        %1216 = vadd.xlane.f32.xlu0 %v1215
        %v1217 = vpop.xlane.xlu0 %1216
        %v1218 = vadd.f32 %v1060, %v1061
        %1219 = vadd.xlane.f32.xlu0 %v1218
        %v1220 = vpop.xlane.xlu0 %1219
        %v1221 = vadd.f32 %v1062, %v1063
        %1222 = vadd.xlane.f32.xlu0 %v1221
        %v1223 = vpop.xlane.xlu0 %1222
        %v1224 = vadd.f32 %v1064, %v1065
        %1225 = vadd.xlane.f32.xlu0 %v1224
        %v1226 = vpop.xlane.xlu0 %1225
        %v1227 = vadd.f32 %v1066, %v1067
        %1228 = vadd.xlane.f32.xlu0 %v1227
        %v1229 = vpop.xlane.xlu0 %1228
        %v1230 = vadd.f32 %v1068, %v1069
        %1231 = vadd.xlane.f32.xlu0 %v1230
        %v1232 = vpop.xlane.xlu0 %1231
        %v1233 = vadd.f32 %v1070, %v1071
        %1234 = vadd.xlane.f32.xlu0 %v1233
        %v1235 = vpop.xlane.xlu0 %1234
        %v1236 = vadd.f32 %v1072, %v1073
        %1237 = vadd.xlane.f32.xlu0 %v1236
        %v1238 = vpop.xlane.xlu0 %1237
        %v1239 = vadd.f32 %v1074, %v1075
        %1240 = vadd.xlane.f32.xlu0 %v1239
        %v1241 = vpop.xlane.xlu0 %1240
        %v1242 = vadd.f32 %v1076, %v1077
        %1243 = vadd.xlane.f32.xlu0 %v1242
        %v1244 = vpop.xlane.xlu0 %1243
        %v1245 = vadd.f32 %v1078, %v1079
        %1246 = vadd.xlane.f32.xlu0 %v1245
        %v1247 = vpop.xlane.xlu0 %1246
        %v1248 = vadd.f32 %v1080, %v1081
        %1249 = vadd.xlane.f32.xlu0 %v1248
        %v1250 = vpop.xlane.xlu0 %1249
        %v1251 = vadd.f32 %v1082, %v1083
        %1252 = vadd.xlane.f32.xlu0 %v1251
        %v1253 = vpop.xlane.xlu0 %1252
        %v1254 = vadd.f32 %v1084, %v1085
        %1255 = vadd.xlane.f32.xlu0 %v1254
        %v1256 = vpop.xlane.xlu0 %1255
        %v1257 = vadd.f32 %v1086, %v1087
        %1258 = vadd.xlane.f32.xlu0 %v1257
        %v1259 = vpop.xlane.xlu0 %1258
        %v1260 = vadd.f32 %v1088, %v1089
        %1261 = vadd.xlane.f32.xlu0 %v1260
        %v1262 = vpop.xlane.xlu0 %1261
        %v1263 = vadd.f32 %v1090, %v1091
        %1264 = vadd.xlane.f32.xlu0 %v1263
        %v1265 = vpop.xlane.xlu0 %1264
        %v1266 = vadd.f32 %v1092, %v1093
        %1267 = vadd.xlane.f32.xlu0 %v1266
        %v1268 = vpop.xlane.xlu0 %1267
        %v1269 = vadd.f32 %v1094, %v1095
        %1270 = vadd.xlane.f32.xlu0 %v1269
        %v1271 = vpop.xlane.xlu0 %1270
        %v1272 = vadd.f32 %v1096, %v1097
        %1273 = vadd.xlane.f32.xlu0 %v1272
        %v1274 = vpop.xlane.xlu0 %1273
        %v1275 = vadd.f32 %v1098, %v1099
        %1276 = vadd.xlane.f32.xlu0 %v1275
        %v1277 = vpop.xlane.xlu0 %1276
        %v1278 = vadd.f32 %v1100, %v1101
        %1279 = vadd.xlane.f32.xlu0 %v1278
        %v1280 = vpop.xlane.xlu0 %1279
        %v1281 = vadd.f32 %v1102, %v1103
        %1282 = vadd.xlane.f32.xlu0 %v1281
        %v1283 = vpop.xlane.xlu0 %1282
        %v1284 = vadd.f32 %v1104, %v1105
        %1285 = vadd.xlane.f32.xlu0 %v1284
        %v1286 = vpop.xlane.xlu0 %1285
        %v1287 = vadd.f32 %v1106, %v1107
        %1288 = vadd.xlane.f32.xlu0 %v1287
        %v1289 = vpop.xlane.xlu0 %1288
        %v1290 = vadd.f32 %v1108, %v1109
        %1291 = vadd.xlane.f32.xlu0 %v1290
        %v1292 = vpop.xlane.xlu0 %1291
        %v1293 = vadd.f32 %v1110, %v1111
        %1294 = vadd.xlane.f32.xlu0 %v1293
        %v1295 = vpop.xlane.xlu0 %1294
        %v1296 = vadd.f32 %v1112, %v1113
        %1297 = vadd.xlane.f32.xlu0 %v1296
        %v1298 = vpop.xlane.xlu0 %1297
        %v1299 = vadd.f32 %v1114, %v1115
        %1300 = vadd.xlane.f32.xlu0 %v1299
        %v1301 = vpop.xlane.xlu0 %1300
        %v1302 = vadd.f32 %v1116, %v1117
        %1303 = vadd.xlane.f32.xlu0 %v1302
        %v1304 = vpop.xlane.xlu0 %1303
        %v1305 = vadd.f32 %v1118, %v1119
        %1306 = vadd.xlane.f32.xlu0 %v1305
        %v1307 = vpop.xlane.xlu0 %1306
        %v1308 = vadd.f32 %v1120, %v1121
        %1309 = vadd.xlane.f32.xlu0 %v1308
        %v1310 = vpop.xlane.xlu0 %1309
        %v1311 = vadd.f32 %v1122, %v1123
        %1312 = vadd.xlane.f32.xlu0 %v1311
        %v1313 = vpop.xlane.xlu0 %1312
        %v1314 = vadd.f32 %v1124, %v1125
        %1315 = vadd.xlane.f32.xlu0 %v1314
        %v1316 = vpop.xlane.xlu0 %1315
        %v1317 = vadd.f32 %v1126, %v1127
        %1318 = vadd.xlane.f32.xlu0 %v1317
        %v1319 = vpop.xlane.xlu0 %1318
        %v1384 = vlaneseq
        %v1385 = vshrl.u32 %v1384, 7
        %v1386 = vsub.s32 %v654, %v1385
        %v1387 = vrot.slane %v1130, %v1386
        %v1388 = vlaneseq
        %v1389 = vshrl.u32 %v1388, 7
        %v1390 = vsub.s32 %v659, %v1389
        %v1391 = vrot.slane %v1133, %v1390
        %v1392 = vsel %vm664, %v1391, %v1387
        %v1393 = vlaneseq
        %v1394 = vshrl.u32 %v1393, 7
        %v1395 = vsub.s32 %v666, %v1394
        %v1396 = vrot.slane %v1136, %v1395
        %v1397 = vsel %vm671, %v1396, %v1392
        %v1398 = vlaneseq
        %v1399 = vshrl.u32 %v1398, 7
        %v1400 = vsub.s32 %v673, %v1399
        %v1401 = vrot.slane %v1139, %v1400
        %v1402 = vsel %vm678, %v1401, %v1397
        %v1403 = vlaneseq
        %v1404 = vshrl.u32 %v1403, 7
        %v1405 = vsub.s32 %v680, %v1404
        %v1406 = vrot.slane %v1142, %v1405
        %v1407 = vsel %vm685, %v1406, %v1402
        %v1408 = vlaneseq
        %v1409 = vshrl.u32 %v1408, 7
        %v1410 = vsub.s32 %v687, %v1409
        %v1411 = vrot.slane %v1145, %v1410
        %v1412 = vsel %vm692, %v1411, %v1407
        %v1413 = vlaneseq
        %v1414 = vshrl.u32 %v1413, 7
        %v1415 = vsub.s32 %v694, %v1414
        %v1416 = vrot.slane %v1148, %v1415
        %v1417 = vsel %vm699, %v1416, %v1412
        %v1418 = vlaneseq
        %v1419 = vshrl.u32 %v1418, 7
        %v1420 = vsub.s32 %v701, %v1419
        %v1421 = vrot.slane %v1151, %v1420
        %v1422 = vsel %vm706, %v1421, %v1417
        %v1423 = vlaneseq
        %v1424 = vshrl.u32 %v1423, 7
        %v1425 = vsub.s32 %v654, %v1424
        %v1426 = vrot.slane %v1154, %v1425
        %v1427 = vlaneseq
        %v1428 = vshrl.u32 %v1427, 7
        %v1429 = vsub.s32 %v659, %v1428
        %v1430 = vrot.slane %v1157, %v1429
        %v1431 = vsel %vm664, %v1430, %v1426
        %v1432 = vlaneseq
        %v1433 = vshrl.u32 %v1432, 7
        %v1434 = vsub.s32 %v666, %v1433
        %v1435 = vrot.slane %v1160, %v1434
        %v1436 = vsel %vm671, %v1435, %v1431
        %v1437 = vlaneseq
        %v1438 = vshrl.u32 %v1437, 7
        %v1439 = vsub.s32 %v673, %v1438
        %v1440 = vrot.slane %v1163, %v1439
        %v1441 = vsel %vm678, %v1440, %v1436
        %v1442 = vlaneseq
        %v1443 = vshrl.u32 %v1442, 7
        %v1444 = vsub.s32 %v680, %v1443
        %v1445 = vrot.slane %v1166, %v1444
        %v1446 = vsel %vm685, %v1445, %v1441
        %v1447 = vlaneseq
        %v1448 = vshrl.u32 %v1447, 7
        %v1449 = vsub.s32 %v687, %v1448
        %v1450 = vrot.slane %v1169, %v1449
        %v1451 = vsel %vm692, %v1450, %v1446
        %v1452 = vlaneseq
        %v1453 = vshrl.u32 %v1452, 7
        %v1454 = vsub.s32 %v694, %v1453
        %v1455 = vrot.slane %v1172, %v1454
        %v1456 = vsel %vm699, %v1455, %v1451
        %v1457 = vlaneseq
        %v1458 = vshrl.u32 %v1457, 7
        %v1459 = vsub.s32 %v701, %v1458
        %v1460 = vrot.slane %v1175, %v1459
        %v1461 = vsel %vm706, %v1460, %v1456
        %v1462 = vlaneseq
        %v1463 = vshrl.u32 %v1462, 7
        %v1464 = vsub.s32 %v654, %v1463
        %v1465 = vrot.slane %v1178, %v1464
        %v1466 = vlaneseq
        %v1467 = vshrl.u32 %v1466, 7
        %v1468 = vsub.s32 %v659, %v1467
        %v1469 = vrot.slane %v1181, %v1468
        %v1470 = vsel %vm664, %v1469, %v1465
        %v1471 = vlaneseq
        %v1472 = vshrl.u32 %v1471, 7
        %v1473 = vsub.s32 %v666, %v1472
        %v1474 = vrot.slane %v1184, %v1473
        %v1475 = vsel %vm671, %v1474, %v1470
        %v1476 = vlaneseq
        %v1477 = vshrl.u32 %v1476, 7
        %v1478 = vsub.s32 %v673, %v1477
        %v1479 = vrot.slane %v1187, %v1478
        %v1480 = vsel %vm678, %v1479, %v1475
        %v1481 = vlaneseq
        %v1482 = vshrl.u32 %v1481, 7
        %v1483 = vsub.s32 %v680, %v1482
        %v1484 = vrot.slane %v1190, %v1483
        %v1485 = vsel %vm685, %v1484, %v1480
        %v1486 = vlaneseq
        %v1487 = vshrl.u32 %v1486, 7
        %v1488 = vsub.s32 %v687, %v1487
        %v1489 = vrot.slane %v1193, %v1488
        %v1490 = vsel %vm692, %v1489, %v1485
        %v1491 = vlaneseq
        %v1492 = vshrl.u32 %v1491, 7
        %v1493 = vsub.s32 %v694, %v1492
        %v1494 = vrot.slane %v1196, %v1493
        %v1495 = vsel %vm699, %v1494, %v1490
        %v1496 = vlaneseq
        %v1497 = vshrl.u32 %v1496, 7
        %v1498 = vsub.s32 %v701, %v1497
        %v1499 = vrot.slane %v1199, %v1498
        %v1500 = vsel %vm706, %v1499, %v1495
        %v1501 = vlaneseq
        %v1502 = vshrl.u32 %v1501, 7
        %v1503 = vsub.s32 %v654, %v1502
        %v1504 = vrot.slane %v1202, %v1503
        %v1505 = vlaneseq
        %v1506 = vshrl.u32 %v1505, 7
        %v1507 = vsub.s32 %v659, %v1506
        %v1508 = vrot.slane %v1205, %v1507
        %v1509 = vsel %vm664, %v1508, %v1504
        %v1510 = vlaneseq
        %v1511 = vshrl.u32 %v1510, 7
        %v1512 = vsub.s32 %v666, %v1511
        %v1513 = vrot.slane %v1208, %v1512
        %v1514 = vsel %vm671, %v1513, %v1509
        %v1515 = vlaneseq
        %v1516 = vshrl.u32 %v1515, 7
        %v1517 = vsub.s32 %v673, %v1516
        %v1518 = vrot.slane %v1211, %v1517
        %v1519 = vsel %vm678, %v1518, %v1514
        %v1520 = vlaneseq
        %v1521 = vshrl.u32 %v1520, 7
        %v1522 = vsub.s32 %v680, %v1521
        %v1523 = vrot.slane %v1214, %v1522
        %v1524 = vsel %vm685, %v1523, %v1519
        %v1525 = vlaneseq
        %v1526 = vshrl.u32 %v1525, 7
        %v1527 = vsub.s32 %v687, %v1526
        %v1528 = vrot.slane %v1217, %v1527
        %v1529 = vsel %vm692, %v1528, %v1524
        %v1530 = vlaneseq
        %v1531 = vshrl.u32 %v1530, 7
        %v1532 = vsub.s32 %v694, %v1531
        %v1533 = vrot.slane %v1220, %v1532
        %v1534 = vsel %vm699, %v1533, %v1529
        %v1535 = vlaneseq
        %v1536 = vshrl.u32 %v1535, 7
        %v1537 = vsub.s32 %v701, %v1536
        %v1538 = vrot.slane %v1223, %v1537
        %v1539 = vsel %vm706, %v1538, %v1534
        %v1540 = vlaneseq
        %v1541 = vshrl.u32 %v1540, 7
        %v1542 = vsub.s32 %v654, %v1541
        %v1543 = vrot.slane %v1226, %v1542
        %v1544 = vlaneseq
        %v1545 = vshrl.u32 %v1544, 7
        %v1546 = vsub.s32 %v659, %v1545
        %v1547 = vrot.slane %v1229, %v1546
        %v1548 = vsel %vm664, %v1547, %v1543
        %v1549 = vlaneseq
        %v1550 = vshrl.u32 %v1549, 7
        %v1551 = vsub.s32 %v666, %v1550
        %v1552 = vrot.slane %v1232, %v1551
        %v1553 = vsel %vm671, %v1552, %v1548
        %v1554 = vlaneseq
        %v1555 = vshrl.u32 %v1554, 7
        %v1556 = vsub.s32 %v673, %v1555
        %v1557 = vrot.slane %v1235, %v1556
        %v1558 = vsel %vm678, %v1557, %v1553
        %v1559 = vlaneseq
        %v1560 = vshrl.u32 %v1559, 7
        %v1561 = vsub.s32 %v680, %v1560
        %v1562 = vrot.slane %v1238, %v1561
        %v1563 = vsel %vm685, %v1562, %v1558
        %v1564 = vlaneseq
        %v1565 = vshrl.u32 %v1564, 7
        %v1566 = vsub.s32 %v687, %v1565
        %v1567 = vrot.slane %v1241, %v1566
        %v1568 = vsel %vm692, %v1567, %v1563
        %v1569 = vlaneseq
        %v1570 = vshrl.u32 %v1569, 7
        %v1571 = vsub.s32 %v694, %v1570
        %v1572 = vrot.slane %v1244, %v1571
        %v1573 = vsel %vm699, %v1572, %v1568
        %v1574 = vlaneseq
        %v1575 = vshrl.u32 %v1574, 7
        %v1576 = vsub.s32 %v701, %v1575
        %v1577 = vrot.slane %v1247, %v1576
        %v1578 = vsel %vm706, %v1577, %v1573
        %v1579 = vlaneseq
        %v1580 = vshrl.u32 %v1579, 7
        %v1581 = vsub.s32 %v654, %v1580
        %v1582 = vrot.slane %v1250, %v1581
        %v1583 = vlaneseq
        %v1584 = vshrl.u32 %v1583, 7
        %v1585 = vsub.s32 %v659, %v1584
        %v1586 = vrot.slane %v1253, %v1585
        %v1587 = vsel %vm664, %v1586, %v1582
        %v1588 = vlaneseq
        %v1589 = vshrl.u32 %v1588, 7
        %v1590 = vsub.s32 %v666, %v1589
        %v1591 = vrot.slane %v1256, %v1590
        %v1592 = vsel %vm671, %v1591, %v1587
        %v1593 = vlaneseq
        %v1594 = vshrl.u32 %v1593, 7
        %v1595 = vsub.s32 %v673, %v1594
        %v1596 = vrot.slane %v1259, %v1595
        %v1597 = vsel %vm678, %v1596, %v1592
        %v1598 = vlaneseq
        %v1599 = vshrl.u32 %v1598, 7
        %v1600 = vsub.s32 %v680, %v1599
        %v1601 = vrot.slane %v1262, %v1600
        %v1602 = vsel %vm685, %v1601, %v1597
        %v1603 = vlaneseq
        %v1604 = vshrl.u32 %v1603, 7
        %v1605 = vsub.s32 %v687, %v1604
        %v1606 = vrot.slane %v1265, %v1605
        %v1607 = vsel %vm692, %v1606, %v1602
        %v1608 = vlaneseq
        %v1609 = vshrl.u32 %v1608, 7
        %v1610 = vsub.s32 %v694, %v1609
        %v1611 = vrot.slane %v1268, %v1610
        %v1612 = vsel %vm699, %v1611, %v1607
        %v1613 = vlaneseq
        %v1614 = vshrl.u32 %v1613, 7
        %v1615 = vsub.s32 %v701, %v1614
        %v1616 = vrot.slane %v1271, %v1615
        %v1617 = vsel %vm706, %v1616, %v1612
        %v1618 = vlaneseq
        %v1619 = vshrl.u32 %v1618, 7
        %v1620 = vsub.s32 %v654, %v1619
        %v1621 = vrot.slane %v1274, %v1620
        %v1622 = vlaneseq
        %v1623 = vshrl.u32 %v1622, 7
        %v1624 = vsub.s32 %v659, %v1623
        %v1625 = vrot.slane %v1277, %v1624
        %v1626 = vsel %vm664, %v1625, %v1621
        %v1627 = vlaneseq
        %v1628 = vshrl.u32 %v1627, 7
        %v1629 = vsub.s32 %v666, %v1628
        %v1630 = vrot.slane %v1280, %v1629
        %v1631 = vsel %vm671, %v1630, %v1626
        %v1632 = vlaneseq
        %v1633 = vshrl.u32 %v1632, 7
        %v1634 = vsub.s32 %v673, %v1633
        %v1635 = vrot.slane %v1283, %v1634
        %v1636 = vsel %vm678, %v1635, %v1631
        %v1637 = vlaneseq
        %v1638 = vshrl.u32 %v1637, 7
        %v1639 = vsub.s32 %v680, %v1638
        %v1640 = vrot.slane %v1286, %v1639
        %v1641 = vsel %vm685, %v1640, %v1636
        %v1642 = vlaneseq
        %v1643 = vshrl.u32 %v1642, 7
        %v1644 = vsub.s32 %v687, %v1643
        %v1645 = vrot.slane %v1289, %v1644
        %v1646 = vsel %vm692, %v1645, %v1641
        %v1647 = vlaneseq
        %v1648 = vshrl.u32 %v1647, 7
        %v1649 = vsub.s32 %v694, %v1648
        %v1650 = vrot.slane %v1292, %v1649
        %v1651 = vsel %vm699, %v1650, %v1646
        %v1652 = vlaneseq
        %v1653 = vshrl.u32 %v1652, 7
        %v1654 = vsub.s32 %v701, %v1653
        %v1655 = vrot.slane %v1295, %v1654
        %v1656 = vsel %vm706, %v1655, %v1651
        %v1657 = vlaneseq
        %v1658 = vshrl.u32 %v1657, 7
        %v1659 = vsub.s32 %v654, %v1658
        %v1660 = vrot.slane %v1298, %v1659
        %v1661 = vlaneseq
        %v1662 = vshrl.u32 %v1661, 7
        %v1663 = vsub.s32 %v659, %v1662
        %v1664 = vrot.slane %v1301, %v1663
        %v1665 = vsel %vm664, %v1664, %v1660
        %v1666 = vlaneseq
        %v1667 = vshrl.u32 %v1666, 7
        %v1668 = vsub.s32 %v666, %v1667
        %v1669 = vrot.slane %v1304, %v1668
        %v1670 = vsel %vm671, %v1669, %v1665
        %v1671 = vlaneseq
        %v1672 = vshrl.u32 %v1671, 7
        %v1673 = vsub.s32 %v673, %v1672
        %v1674 = vrot.slane %v1307, %v1673
        %v1675 = vsel %vm678, %v1674, %v1670
        %v1676 = vlaneseq
        %v1677 = vshrl.u32 %v1676, 7
        %v1678 = vsub.s32 %v680, %v1677
        %v1679 = vrot.slane %v1310, %v1678
        %v1680 = vsel %vm685, %v1679, %v1675
        %v1681 = vlaneseq
        %v1682 = vshrl.u32 %v1681, 7
        %v1683 = vsub.s32 %v687, %v1682
        %v1684 = vrot.slane %v1313, %v1683
        %v1685 = vsel %vm692, %v1684, %v1680
        %v1686 = vlaneseq
        %v1687 = vshrl.u32 %v1686, 7
        %v1688 = vsub.s32 %v694, %v1687
        %v1689 = vrot.slane %v1316, %v1688
        %v1690 = vsel %vm699, %v1689, %v1685
        %v1691 = vlaneseq
        %v1692 = vshrl.u32 %v1691, 7
        %v1693 = vsub.s32 %v701, %v1692
        %v1694 = vrot.slane %v1319, %v1693
        %v1695 = vsel %vm706, %v1694, %v1690
        %v1696 = vsel %vm981, %v1461, %v1422
        %v1697 = vsel %vm983, %v1500, %v1696
        %v1698 = vsel %vm985, %v1539, %v1697
        %v1699 = vsel %vm987, %v1578, %v1698
        %v1700 = vsel %vm989, %v1617, %v1699
        %v1701 = vsel %vm991, %v1656, %v1700
        %v1702 = vsel %vm993, %v1695, %v1701
        %v1704 = vadd.f32 %v999, %v1702
        %1705 = vst.msk [vmem:[#allocation3] sm:$0xff] %vm997, %v1704
        // Predicated region
        $region45: #{tpu_custom_call.1} parent=31 // pred_check
          %p1706 = pneg %p261
        $region46: #{tpu_custom_call.1} parent=31 // pred_check_branch
          %1708 = sbr.rel (%p1706) target = $region48
        $region47: #{tpu_custom_call.1} parent=31 // pred_region
          %v1709 = vld [vmem:[#allocation2] sm:$0xff]
          %v1710 = vld [vmem:[#allocation3] sm:$0xff]
          %v1711 = vmul.f32 %v1709, 0.00390625
          %v1712 = vmul.f32 %v1709, %v1711
          %v1713 = vsub.f32 %v1710, %v1712
          %v1714 = vmul.f32 %v1713, 0.003921569
          %v1715 = vmax.f32 %v1714, 0.0
          %v1716 = vrsqrt.pop %v1715
          %v1717 = vmul.f32 %v1715, %v1716
          %vm1718 = vcmp.eq.f32.partialorder %v1715, inf
          %v1719 = vsel %vm1718, %v1715, %v1717
          %vm1720 = vcmp.eq.f32.partialorder %v1715, 0.0
          %v1721 = vand.u32 %v1715, 2147483648
          %v1722 = vsel %vm1720, %v1721, %v1719
          %1724 = vrot.lane.b32.xlu0 %v1722, 64
          %v1725 = vpop.permute.xlu0 %1724
          %v1727 = vsel %vm997, %v1711, %v1725
          %v1728 = vld [vmem:[#allocation7] sm:$0xff]
          %v1729 = vld [vmem:[#allocation7 + $0x8] sm:$0xff]
          %v1730 = vld [vmem:[#allocation7 + $0x10] sm:$0xff]
          %v1731 = vld [vmem:[#allocation7 + $0x18] sm:$0xff]
          %v1732 = vld [vmem:[#allocation7 + $0x20] sm:$0xff]
          %v1733 = vld [vmem:[#allocation7 + $0x28] sm:$0xff]
          %v1734 = vld [vmem:[#allocation7 + $0x30] sm:$0xff]
          %v1735 = vld [vmem:[#allocation7 + $0x38] sm:$0xff]
          %v1736 = vld [vmem:[#allocation7 + $0x40] sm:$0xff]
          %v1737 = vld [vmem:[#allocation7 + $0x48] sm:$0xff]
          %v1738 = vld [vmem:[#allocation7 + $0x50] sm:$0xff]
          %v1739 = vld [vmem:[#allocation7 + $0x58] sm:$0xff]
          %v1740 = vld [vmem:[#allocation7 + $0x60] sm:$0xff]
          %v1741 = vld [vmem:[#allocation7 + $0x68] sm:$0xff]
          %v1742 = vld [vmem:[#allocation7 + $0x70] sm:$0xff]
          %v1743 = vld [vmem:[#allocation7 + $0x78] sm:$0xff]
          %v1744 = vld [vmem:[#allocation7 + $0x80] sm:$0xff]
          %v1745 = vld [vmem:[#allocation7 + $0x88] sm:$0xff]
          %v1746 = vld [vmem:[#allocation7 + $0x90] sm:$0xff]
          %v1747 = vld [vmem:[#allocation7 + $0x98] sm:$0xff]
          %v1748 = vld [vmem:[#allocation7 + $0xa0] sm:$0xff]
          %v1749 = vld [vmem:[#allocation7 + $0xa8] sm:$0xff]
          %v1750 = vld [vmem:[#allocation7 + $0xb0] sm:$0xff]
          %v1751 = vld [vmem:[#allocation7 + $0xb8] sm:$0xff]
          %v1752 = vld [vmem:[#allocation7 + $0xc0] sm:$0xff]
          %v1753 = vld [vmem:[#allocation7 + $0xc8] sm:$0xff]
          %v1754 = vld [vmem:[#allocation7 + $0xd0] sm:$0xff]
          %v1755 = vld [vmem:[#allocation7 + $0xd8] sm:$0xff]
          %v1756 = vld [vmem:[#allocation7 + $0xe0] sm:$0xff]
          %v1757 = vld [vmem:[#allocation7 + $0xe8] sm:$0xff]
          %v1758 = vld [vmem:[#allocation7 + $0xf0] sm:$0xff]
          %v1759 = vld [vmem:[#allocation7 + $0xf8] sm:$0xff]
          %v1760 = vld [vmem:[%s2] sm:$0x3]
          %v1762 = vlaneseq
          %v1763 = vshrl.u32 %v1762, 7
          %v1764 = vsub.s32 0, %v1763
          %v1765 = vrot.slane %v1760, %v1764
          %v1766 = vlaneseq
          %v1767 = vshrl.u32 %v1766, 7
          %v1768 = vsub.s32 1, %v1767
          %v1769 = vrot.slane %v1760, %v1768
          %1772 = vmatprep.subr.mxu0 %v1729
          %1773 = vmatpush1.msra.mxu0 %v1728
          %1774 = vmatprep.subr.mxu0 %v1731
          %1775 = vmatpush1.msra.mxu0 %v1730
          %1776 = vmatprep.subr.mxu0 %v1733
          %1777 = vmatpush1.msra.mxu0 %v1732
          %1778 = vmatprep.subr.mxu0 %v1735
          %1779 = vmatpush1.msra.mxu0 %v1734
          %1780 = vmatprep.subr.mxu0 %v1737
          %1781 = vmatpush1.msra.mxu0 %v1736
          %1782 = vmatprep.subr.mxu0 %v1739
          %1783 = vmatpush1.msra.mxu0 %v1738
          %1784 = vmatprep.subr.mxu0 %v1741
          %1785 = vmatpush1.msra.mxu0 %v1740
          %1786 = vmatprep.subr.mxu0 %v1743
          %1787 = vmatpush1.msra.mxu0 %v1742
          %1788 = vmatprep.subr.mxu0 %v1745
          %1789 = vmatpush1.msra.mxu0 %v1744
          %1790 = vmatprep.subr.mxu0 %v1747
          %1791 = vmatpush1.msra.mxu0 %v1746
          %1792 = vmatprep.subr.mxu0 %v1749
          %1793 = vmatpush1.msra.mxu0 %v1748
          %1794 = vmatprep.subr.mxu0 %v1751
          %1795 = vmatpush1.msra.mxu0 %v1750
          %1796 = vmatprep.subr.mxu0 %v1753
          %1797 = vmatpush1.msra.mxu0 %v1752
          %1798 = vmatprep.subr.mxu0 %v1755
          %1799 = vmatpush1.msra.mxu0 %v1754
          %1800 = vmatprep.subr.mxu0 %v1757
          %1801 = vmatpush1.msra.mxu0 %v1756
          %1802 = vmatprep.subr.mxu0 %v1759
          %1803 = vmatpush1.msra.mxu0 %v1758
          %1804 = vmatprep.subr.mxu0 0.0
          %1805 = vmatpush1.msra.mxu0 0.0
          %1806 = vmatprep.subr.mxu0 0.0
          %1807 = vmatpush1.msra.mxu0 0.0
          %1808 = vmatprep.subr.mxu0 0.0
          %1809 = vmatpush1.msra.mxu0 0.0
          %1810 = vmatprep.subr.mxu0 0.0
          %1811 = vmatpush1.msra.mxu0 0.0
          %1812 = vmatprep.subr.mxu0 0.0
          %1813 = vmatpush1.msra.mxu0 0.0
          %1814 = vmatprep.subr.mxu0 0.0
          %1815 = vmatpush1.msra.mxu0 0.0
          %1816 = vmatprep.subr.mxu0 0.0
          %1817 = vmatpush1.msra.mxu0 0.0
          %1818 = vmatprep.subr.mxu0 0.0
          %1819 = vmatpush1.msra.mxu0 0.0
          %1820 = vmatprep.subr.mxu0 0.0
          %1821 = vmatpush1.msra.mxu0 0.0
          %1822 = vmatprep.subr.mxu0 0.0
          %1823 = vmatpush1.msra.mxu0 0.0
          %1824 = vmatprep.subr.mxu0 0.0
          %1825 = vmatpush1.msra.mxu0 0.0
          %1826 = vmatprep.subr.mxu0 0.0
          %1827 = vmatpush1.msra.mxu0 0.0
          %1828 = vmatprep.subr.mxu0 0.0
          %1829 = vmatpush1.msra.mxu0 0.0
          %1830 = vmatprep.subr.mxu0 0.0
          %1831 = vmatpush1.msra.mxu0 0.0
          %1832 = vmatprep.subr.mxu0 0.0
          %1833 = vmatpush1.msra.mxu0 0.0
          %1834 = vmatprep.subr.mxu0 0.0
          %1835 = vmatpush1.msra.mxu0 0.0
          %1836 = vmatprep.mubr.f32.mxu0 0.0
          %1837 = vmatmul.mubr.f32.gmra.mrb[0].mxu0 %v1727
          %v1838 = vpop.f32.mrb[0].mxu0
          %v1839 = vadd.f32 %v1765, %v1838
          %v1840 = vpop.f32.mrb[0].mxu0
          %v1841 = vadd.f32 %v1769, %v1840
          %1842 = vdwg.mxu0
          %1843 = vst [vmem:[%s258] sm:$0xff] %v1839
          %1844 = vst [vmem:[%s258 + $0x8] sm:$0xff] %v1841
          %v1845 = vmax.f32 %v1839, 0.0
          %v1846 = vmax.f32 %v1841, 0.0
          %1847 = vst [vmem:[%s251] sm:$0xff] %v1845
          %1848 = vst [vmem:[%s251 + $0x8] sm:$0xff] %v1846
        $region48: #{tpu_custom_call.1} parent=31 // pred_fallthru
          _
        %s1849 = sand.u32 %s116, 1
        %s1850 = scalar_lea.sflag [#allocation6], %s1849
        %s1851 = sand.u32 %s116, 1
        %s1852 = smul.addr %s1851, 16
        %s1853 = scalar_lea.vmem [#allocation9], %s1852
        %s1854 = sand.u32 %s142, 1
        %s1855 = scalar_lea.sflag [#allocation11], %s1854
        %s1856 = sand.u32 %s142, 1
        %s1857 = smul.addr %s1856, 16
        %s1858 = scalar_lea.vmem [#allocation10], %s1857
        // Predicated region
        $region49: #{tpu_custom_call.1} parent=31 // pred_check
          %p1859 = pneg %p126
        $region50: #{tpu_custom_call.1} parent=31 // pred_check_branch
          %1861 = sbr.rel (%p1859) target = $region52
        $region51: #{tpu_custom_call.1} parent=31 // pred_region
          %s1863 = ssub.s32 256, 256
          %1864 = vsyncadd %s1850, %s1863
          %s1865 = smul.addr %s30, 2
          %s1866 = smul.addr %s1865, 128
          %s1867 = scalar_lea.hbm %s3, %s1866
          %s1869 = sshll.u32 %s1853, 4
          %s1870 = int_to_ptr.vmem [resolvable:$true] %s1869
          %1872 = dma.vmem_to_hbm [thread:$0]  %s1870, 256, %s1867, %s1850
        $region52: #{tpu_custom_call.1} parent=31 // pred_fallthru
          _
        // Predicated region
        $region53: #{tpu_custom_call.1} parent=31 // pred_check
          %p1873 = pneg %p152
        $region54: #{tpu_custom_call.1} parent=31 // pred_check_branch
          %1875 = sbr.rel (%p1873) target = $region56
        $region55: #{tpu_custom_call.1} parent=31 // pred_region
          %s1877 = ssub.s32 256, 256
          %1878 = vsyncadd %s1855, %s1877
          %s1879 = smul.addr %s30, 2
          %s1880 = smul.addr %s1879, 128
          %s1881 = scalar_lea.hbm %s4, %s1880
          %s1883 = sshll.u32 %s1858, 4
          %s1884 = int_to_ptr.vmem [resolvable:$true] %s1883
          %1886 = dma.vmem_to_hbm [thread:$0]  %s1884, 256, %s1881, %s1855
        $region56: #{tpu_custom_call.1} parent=31 // pred_fallthru
          _
      $region32: #{tpu_custom_call.1} parent=5 // pred_fallthru
        _
      %p1887 = scmp.le.s32.totalorder 2, %s21
      // Predicated region
      $region57: #{tpu_custom_call.1} parent=5 // pred_check
        %p1888 = pneg %p1887
      $region58: #{tpu_custom_call.1} parent=5 // pred_check_branch
        %1890 = sbr.rel (%p1888) target = $region60
      $region59: #{tpu_custom_call.1} parent=5 // pred_region
        %s1891 = ssub.s32 %s21, 2
        // Predicated region
        $region61: #{tpu_custom_call.1} parent=59 // pred_check
          %p1892 = pneg %p132
        $region62: #{tpu_custom_call.1} parent=59 // pred_check_branch
          %1894 = sbr.rel (%p1892) target = $region64
        $region63: #{tpu_custom_call.1} parent=59 // pred_region
          %s1895 = sand.u32 %s117, 1
          %s1896 = scalar_lea.sflag [#allocation6], %s1895
          %s1897 = sand.u32 %s117, 1
          %s1898 = smul.addr %s1897, 16
          %s1899 = scalar_lea.vmem [#allocation9], %s1898
          %1900 = dma.done %s1896, 256
        $region64: #{tpu_custom_call.1} parent=59 // pred_fallthru
          _
        // Predicated region
        $region65: #{tpu_custom_call.1} parent=59 // pred_check
          %p1901 = pneg %p158
        $region66: #{tpu_custom_call.1} parent=59 // pred_check_branch
          %1903 = sbr.rel (%p1901) target = $region68
        $region67: #{tpu_custom_call.1} parent=59 // pred_region
          %s1904 = sand.u32 %s143, 1
          %s1905 = scalar_lea.sflag [#allocation11], %s1904
          %s1906 = sand.u32 %s143, 1
          %s1907 = smul.addr %s1906, 16
          %s1908 = scalar_lea.vmem [#allocation10], %s1907
          %1909 = dma.done %s1905, 256
        $region68: #{tpu_custom_call.1} parent=59 // pred_fallthru
          _
      $region60: #{tpu_custom_call.1} parent=5 // pred_fallthru
        _
    $region6: #{tpu_custom_call.1} parent=1 // loop_footer
      %s25 = sadd.s32 1, %s21
    $region7: #{tpu_custom_call.1} parent=1 // loop_footer_branch
      %20 = sbr.rel target = $region3
    $region8: #{tpu_custom_call.1} parent=1 // loop_exit
      _
    %1910 = vsyncpa [#allocation5], 1
    %s1911 = scalar_lea.sflag [#allocation5], 1
    %1912 = vsyncpa %s1911, 1
    %1913 = vsyncpa [#allocation8], 1
    %1914 = vsyncpa [#allocation6], 1
    %s1915 = scalar_lea.sflag [#allocation6], 1
    %1916 = vsyncpa %s1915, 1
    %1917 = vsyncpa [#allocation11], 1
    %s1918 = scalar_lea.sflag [#allocation11], 1
    %1919 = vsyncpa %s1918, 1

</llo_original>
